<compile_context>
chip_gen: v7x
topology: tpu7x:2x2x1
jax: 0.10.0
libtpu: 0.0.40
codegen_flags: <defaults>
</compile_context>

<pallas_src>
import functools

import numpy as np

import jax
import jax.numpy as jnp
from jax import lax
from jax.experimental import pallas as pl
from jax.experimental.pallas import tpu as pltpu


# ----------------------------- Pallas kernel --------------------------------
def _cdrb_kernel(x_ref, film_ref, a1_ref, a2_ref, bmat_ref, rsh_ref, pr_ref,
                 qsc_ref, bias_ref, o_ref):
    """One batch element per grid step.  Layouts:
       x_ref    : (1, H, Cin*W)      lane-packed input slab
       film_ref : (1, 4, Cin*W)      rows = [gamma1, beta1, gamma2, beta2] (pre-broadcast)
       a1_ref   : (3, Cin*W, Cin*W)  conv1 weights with column shift+reflect folded in
       a2_ref   : (3, Cin*W, Cout*Wo) conv2 weights with col shift+reflect AND col-pool folded
       bmat_ref : (Cin*W, Cin*W)     per-channel block-averaging matrix (1/(H*W) blocks)
       rsh_ref  : (3, H, H)          row shift+reflect operators (dy = 0,1,2; [1] = I)
       pr_ref   : (3, Ho, H)         row-pool @ row-shift operators ([1] = plain row pool)
       qsc_ref  : (Cin*W, Cout*Wo)   shortcut: col-pool + 1x1 conv folded
       bias_ref : (1, Cout*Wo)       shortcut bias, pre-broadcast along lanes
       o_ref    : (1, Ho, Cout*Wo)   lane-dense output slab
    """
    eps = 1e-5
    x = x_ref[0]                      # (H, Cin*W)
    bm = bmat_ref[...]                # (Cin*W, Cin*W)
    film = film_ref[0]                # (4, Cin*W)

    def cond_in_relu(act, g_row, b_row):
        # Per-channel instance norm over the (H x W) block + FiLM affine + ReLU,
        # fully lane-packed: stats via sublane reduce + block-averaging matmul.
        s1 = jnp.sum(act, axis=0, keepdims=True)                    # (1, Cin*W)
        s2 = jnp.sum(act * act, axis=0, keepdims=True)              # (1, Cin*W)
        mu = jnp.dot(s1, bm, preferred_element_type=jnp.float32)    # per-channel mean
        m2 = jnp.dot(s2, bm, preferred_element_type=jnp.float32)    # per-channel E[x^2]
        inv = lax.rsqrt(m2 - mu * mu + eps)
        y = (act - mu) * (g_row * inv) + b_row
        return jnp.maximum(y, 0.0)

    # ---- cnorm1 + ReLU + conv1 (reflect pad + 3x3 conv as 5 MXU matmuls) ----
    h = cond_in_relu(x, film[0:1], film[1:2])
    t0 = jnp.dot(rsh_ref[0], h, preferred_element_type=jnp.float32)   # row tap dy=0
    t2 = jnp.dot(rsh_ref[2], h, preferred_element_type=jnp.float32)   # row tap dy=2
    h1 = (jnp.dot(t0, a1_ref[0], preferred_element_type=jnp.float32)
          + jnp.dot(h, a1_ref[1], preferred_element_type=jnp.float32)
          + jnp.dot(t2, a1_ref[2], preferred_element_type=jnp.float32))  # (H, Cin*W)

    # ---- cnorm2 + ReLU + conv2 + 2x2 avg-pool (pool folded into PR / A2) ----
    h = cond_in_relu(h1, film[2:3], film[3:4])
    main = (jnp.dot(jnp.dot(pr_ref[0], h, preferred_element_type=jnp.float32),
                    a2_ref[0], preferred_element_type=jnp.float32)
            + jnp.dot(jnp.dot(pr_ref[1], h, preferred_element_type=jnp.float32),
                      a2_ref[1], preferred_element_type=jnp.float32)
            + jnp.dot(jnp.dot(pr_ref[2], h, preferred_element_type=jnp.float32),
                      a2_ref[2], preferred_element_type=jnp.float32))   # (Ho, Cout*Wo)

    # ---- shortcut: avgpool(x) -> 1x1 conv + bias (pool/conv folded) --------
    sc = jnp.dot(jnp.dot(pr_ref[1], x, preferred_element_type=jnp.float32),
                 qsc_ref[...], preferred_element_type=jnp.float32)      # (Ho, Cout*Wo)

    o_ref[0] = (main + sc + bias_ref[...]).astype(o_ref.dtype)


# -------------------------- parameter preparation ---------------------------
def _spectral_normalize(w, n_iter=50):
    """Divide a conv weight (out, in, kh, kw) by its spectral norm (reshape-to-(out,-1))."""
    out_dim = w.shape[0]
    wm = w.reshape(out_dim, -1).astype(jnp.float32)
    v = jnp.ones((wm.shape[1],), jnp.float32)
    v = v / jnp.linalg.norm(v)

    def body(_, v):
        u = wm @ v
        u = u / (jnp.linalg.norm(u) + 1e-12)
        v2 = wm.T @ u
        return v2 / (jnp.linalg.norm(v2) + 1e-12)

    v = lax.fori_loop(0, n_iter, body, v)
    sigma = jnp.linalg.norm(wm @ v)
    return w / sigma


def _refl(i, n):
    if i < 0:
        return -i
    if i > n - 1:
        return 2 * (n - 1) - i
    return i


def prepare_params(raw, H, W):
    """Once-per-weight-update preprocessing: spectral norm + all conv/pool operator
    matrices consumed by the Pallas kernel (hoisted out of the forward path)."""
    Cin = raw["w1"].shape[0]
    Cout = raw["w2"].shape[0]
    Ho, Wo = H // 2, W // 2

    w1 = _spectral_normalize(raw["w1"])                                 # (Cin, Cin, 3, 3)
    w2 = _spectral_normalize(raw["w2"])                                 # (Cout, Cin, 3, 3)
    wsc = _spectral_normalize(raw["wsc"]).reshape(Cout, Cin)            # (Cout, Cin)
    bsc = raw["bsc"].astype(jnp.float32)                                # (Cout,)

    # Column shift + reflect operators (applied on the right), dx in {0,1,2}.
    C = np.zeros((3, W, W), np.float32)
    for dx in range(3):
        for xo in range(W):
            C[dx, _refl(xo + dx - 1, W), xo] = 1.0
    # Row shift + reflect operators (applied on the left), dy in {0,1,2}; Rsh[1] = I.
    Rsh = np.zeros((3, H, H), np.float32)
    for dy in range(3):
        for y in range(H):
            Rsh[dy, y, _refl(y + dy - 1, H)] = 1.0
    # 2x2 average pooling, split into a row factor P and a column factor colpool.
    P = np.zeros((Ho, H), np.float32)
    for y in range(H):
        P[y // 2, y] = 0.5
    colpool = np.zeros((W, Wo), np.float32)
    for xx in range(W):
        colpool[xx, xx // 2] = 0.5
    PR = np.einsum("oh,dhk->dok", P, Rsh).astype(np.float32)            # (3, Ho, H)

    # Conv weights folded with the column shift (+ column pool for conv2 / shortcut).
    A1 = jnp.stack([sum(jnp.kron(w1[:, :, dy, dx].T, jnp.asarray(C[dx]))
                        for dx in range(3)) for dy in range(3)])        # (3, Cin*W, Cin*W)
    A2 = jnp.stack([sum(jnp.kron(w2[:, :, dy, dx].T, jnp.asarray(C[dx] @ colpool))
                        for dx in range(3)) for dy in range(3)])        # (3, Cin*W, Cout*Wo)
    Qsc = jnp.kron(wsc.T, jnp.asarray(colpool))                         # (Cin*W, Cout*Wo)
    # Per-channel block averaging matrix for instance-norm statistics.
    Bmat = jnp.asarray(np.kron(np.eye(Cin, dtype=np.float32),
                               np.ones((W, W), np.float32)) / float(H * W))
    bias = jnp.repeat(bsc, Wo)[None, :].astype(jnp.float32)             # (1, Cout*Wo)

    return {
        # kernel operator form
        "A1": A1.astype(jnp.float32), "A2": A2.astype(jnp.float32),
        "Qsc": Qsc.astype(jnp.float32), "Bmat": Bmat,
        "Rsh": jnp.asarray(Rsh), "PR": jnp.asarray(PR), "bias": bias,
        # FiLM projections (per-forward glue)
        "Wg1": raw["Wg1"], "Wb1": raw["Wb1"], "Wg2": raw["Wg2"], "Wb2": raw["Wb2"],
        # plain normalized weights (used by the pure-JAX reference)
        "w1": w1, "w2": w2, "wsc": wsc, "bsc": bsc,
    }


def _film(code, params):
    """Conditional-IN affine parameters from `code` (tiny glue matmuls)."""
    g1 = 1.0 + code @ params["Wg1"].T
    b1 = code @ params["Wb1"].T
    g2 = 1.0 + code @ params["Wg2"].T
    b2 = code @ params["Wb2"].T
    return g1, b1, g2, b2


# ------------------------------ forward pass ---------------------------------
def con_down_residual_block(x, code, params):
    """Pallas forward of ConDownResidualBlock (return_con=False).
    x: (N, Cin, H, W) float32 NCHW, code: (N, code_dim) float32."""
    N, Cin, H, W = x.shape
    Cout = params["w2"].shape[0]
    Ho, Wo = H // 2, W // 2
    CinW, CoutWo = Cin * W, Cout * Wo

    g1, b1, g2, b2 = _film(code, params)                                # (N, Cin) each
    film = jnp.stack([jnp.repeat(g1, W, axis=1), jnp.repeat(b1, W, axis=1),
                      jnp.repeat(g2, W, axis=1), jnp.repeat(b2, W, axis=1)],
                     axis=1).astype(jnp.float32)                        # (N, 4, Cin*W)

    # Lane-packed input slab: channel c occupies lanes [c*W, (c+1)*W).
    xpk = x.transpose(0, 2, 1, 3).reshape(N, H, CinW).astype(jnp.float32)

    out_pk = pl.pallas_call(
        _cdrb_kernel,
        out_shape=jax.ShapeDtypeStruct((N, Ho, CoutWo), jnp.float32),
        grid_spec=pltpu.PrefetchScalarGridSpec(
            num_scalar_prefetch=0,
            grid=(N,),
            in_specs=[
                pl.BlockSpec((1, H, CinW), lambda b: (b, 0, 0)),        # x slab
                pl.BlockSpec((1, 4, CinW), lambda b: (b, 0, 0)),        # FiLM rows
                pl.BlockSpec((3, CinW, CinW), lambda b: (0, 0, 0)),     # A1
                pl.BlockSpec((3, CinW, CoutWo), lambda b: (0, 0, 0)),   # A2 (+pool)
                pl.BlockSpec((CinW, CinW), lambda b: (0, 0)),           # Bmat
                pl.BlockSpec((3, H, H), lambda b: (0, 0, 0)),           # Rsh
                pl.BlockSpec((3, Ho, H), lambda b: (0, 0, 0)),          # PR
                pl.BlockSpec((CinW, CoutWo), lambda b: (0, 0)),         # Qsc
                pl.BlockSpec((1, CoutWo), lambda b: (0, 0)),            # bias
            ],
            out_specs=pl.BlockSpec((1, Ho, CoutWo), lambda b: (b, 0, 0)),
        ),
        compiler_params=pltpu.CompilerParams(
            dimension_semantics=("parallel",),   # batch across v7x TensorCores
        ),
    )(xpk, film, params["A1"], params["A2"], params["Bmat"],
      params["Rsh"], params["PR"], params["Qsc"], params["bias"])

    # (N, Ho, Cout*Wo) -> NCHW (4 KiB reshape/transpose, essentially free).
    return out_pk.reshape(N, Ho, Cout, Wo).transpose(0, 2, 1, 3)


# ------------------------------ pure-JAX reference ---------------------------
def reference_forward(x, code, params):
    eps = 1e-5
    g1, b1, g2, b2 = _film(code, params)

    def cond_in(h, g, b):
        mu = jnp.mean(h, axis=(2, 3), keepdims=True)
        var = jnp.mean((h - mu) ** 2, axis=(2, 3), keepdims=True)
        return g[:, :, None, None] * (h - mu) * lax.rsqrt(var + eps) + b[:, :, None, None]

    def conv3x3_reflect(h, w):
        hp = jnp.pad(h, ((0, 0), (0, 0), (1, 1), (1, 1)), mode="reflect")
        dn = lax.conv_dimension_numbers(hp.shape, w.shape, ("NCHW", "OIHW", "NCHW"))
        return lax.conv_general_dilated(hp, w, (1, 1), "VALID", dimension_numbers=dn)

    def avgpool2(h):
        return 0.25 * (h[:, :, 0::2, 0::2] + h[:, :, 0::2, 1::2]
                       + h[:, :, 1::2, 0::2] + h[:, :, 1::2, 1::2])

    h = jax.nn.relu(cond_in(x, g1, b1))
    h = conv3x3_reflect(h, params["w1"])
    h = jax.nn.relu(cond_in(h, g2, b2))
    h = conv3x3_reflect(h, params["w2"])
    h = avgpool2(h)

    sc = avgpool2(x)
    sc = jnp.einsum("oc,nchw->nohw", params["wsc"], sc) \
        + params["bsc"][None, :, None, None]
    return h + sc


# ---------------------------------- main -------------------------------------
if __name__ == "__main__":
    key = jax.random.PRNGKey(0)
    keys = jax.random.split(key, 10)

    N, Cin, H, W = 2, 4, 16, 16
    Cout, code_dim = 8, 8

    x = jax.random.normal(keys[0], (N, Cin, H, W), jnp.float32)
    code = jax.random.normal(keys[1], (N, code_dim), jnp.float32)

    raw = {
        "w1": 0.3 * jax.random.normal(keys[2], (Cin, Cin, 3, 3), jnp.float32),
        "w2": 0.3 * jax.random.normal(keys[3], (Cout, Cin, 3, 3), jnp.float32),
        "wsc": 0.3 * jax.random.normal(keys[4], (Cout, Cin, 1, 1), jnp.float32),
        "bsc": 0.1 * jax.random.normal(keys[5], (Cout,), jnp.float32),
        "Wg1": 0.1 * jax.random.normal(keys[6], (Cin, code_dim), jnp.float32),
        "Wb1": 0.1 * jax.random.normal(keys[7], (Cin, code_dim), jnp.float32),
        "Wg2": 0.1 * jax.random.normal(keys[8], (Cin, code_dim), jnp.float32),
        "Wb2": 0.1 * jax.random.normal(keys[9], (Cin, code_dim), jnp.float32),
    }

    # Spectral norm + operator-matrix construction hoisted out of the forward path.
    params = prepare_params(raw, H, W)

    fwd = jax.jit(con_down_residual_block)
    out = jax.block_until_ready(fwd(x, code, params))
    assert out.shape == (N, Cout, H // 2, W // 2), out.shape

    ref = reference_forward(x, code, params)
    err = float(jnp.max(jnp.abs(out - ref)))
    assert err < 1e-3, f"max abs error vs reference: {err}"

    print("KERNEL_OK")
</pallas_src>

<mosaic_0001>
module attributes {stable_mosaic.version = 11 : i64} {
  func.func @_cdrb_kernel(%arg0: i32, %arg1: memref<1x16x64xf32, #tpu.memory_space<vmem>>, %arg2: memref<1x4x64xf32, #tpu.memory_space<vmem>>, %arg3: memref<3x64x64xf32, #tpu.memory_space<vmem>>, %arg4: memref<3x64x64xf32, #tpu.memory_space<vmem>>, %arg5: memref<64x64xf32, #tpu.memory_space<vmem>>, %arg6: memref<3x16x16xf32, #tpu.memory_space<vmem>>, %arg7: memref<3x8x16xf32, #tpu.memory_space<vmem>>, %arg8: memref<64x64xf32, #tpu.memory_space<vmem>>, %arg9: memref<1x64xf32, #tpu.memory_space<vmem>>, %arg10: memref<1x8x64xf32, #tpu.memory_space<vmem>>) attributes {dimension_semantics = [#tpu.dimension_semantics<parallel>], iteration_bounds = array<i64: 2>, scalar_prefetch = 0 : i64, scratch_operands = 0 : i64, tpu.core_type = #tpu.core_type<tc>, window_params = [{transform_indices = @transform_0, window_bounds = array<i64: 1, 16, 64>}, {transform_indices = @transform_1, window_bounds = array<i64: 1, 4, 64>}, {pipeline_mode = #tpu.pipeline_mode<synchronous>, transform_indices = @transform_2, window_bounds = array<i64: 3, 64, 64>}, {pipeline_mode = #tpu.pipeline_mode<synchronous>, transform_indices = @transform_3, window_bounds = array<i64: 3, 64, 64>}, {pipeline_mode = #tpu.pipeline_mode<synchronous>, transform_indices = @transform_4, window_bounds = array<i64: 64, 64>}, {pipeline_mode = #tpu.pipeline_mode<synchronous>, transform_indices = @transform_5, window_bounds = array<i64: 3, 16, 16>}, {pipeline_mode = #tpu.pipeline_mode<synchronous>, transform_indices = @transform_6, window_bounds = array<i64: 3, 8, 16>}, {pipeline_mode = #tpu.pipeline_mode<synchronous>, transform_indices = @transform_7, window_bounds = array<i64: 64, 64>}, {pipeline_mode = #tpu.pipeline_mode<synchronous>, transform_indices = @transform_8, window_bounds = array<i64: 1, 64>}, {transform_indices = @transform_9, window_bounds = array<i64: 1, 8, 64>}]} {
    %c0 = arith.constant 0 : index
    %c0_0 = arith.constant 0 : index
    %c0_1 = arith.constant 0 : index
    %0 = vector.load %arg1[%c0, %c0_0, %c0_1] : memref<1x16x64xf32, #tpu.memory_space<vmem>>, vector<1x16x64xf32>
    %1 = vector.shape_cast %0 : vector<1x16x64xf32> to vector<16x64xf32>
    %c0_2 = arith.constant 0 : index
    %c0_3 = arith.constant 0 : index
    %2 = vector.load %arg5[%c0_2, %c0_3] : memref<64x64xf32, #tpu.memory_space<vmem>>, vector<64x64xf32>
    %c0_4 = arith.constant 0 : index
    %c0_5 = arith.constant 0 : index
    %c0_6 = arith.constant 0 : index
    %3 = vector.load %arg2[%c0_4, %c0_5, %c0_6] : memref<1x4x64xf32, #tpu.memory_space<vmem>>, vector<1x4x64xf32>
    %4 = vector.shape_cast %3 : vector<1x4x64xf32> to vector<4x64xf32>
    %5 = vector.extract_strided_slice %4 {offsets = [0, 0], sizes = [1, 64], strides = [1, 1]} : vector<4x64xf32> to vector<1x64xf32>
    %6 = vector.extract_strided_slice %4 {offsets = [1, 0], sizes = [1, 64], strides = [1, 1]} : vector<4x64xf32> to vector<1x64xf32>
    %cst = arith.constant dense<0.000000e+00> : vector<64xf32>
    %7 = vector.multi_reduction <add>, %1, %cst [0] : vector<16x64xf32> to vector<64xf32>
    %8 = vector.shape_cast %7 : vector<64xf32> to vector<1x64xf32>
    %9 = arith.mulf %1, %1 : vector<16x64xf32>
    %cst_7 = arith.constant dense<0.000000e+00> : vector<64xf32>
    %10 = vector.multi_reduction <add>, %9, %cst_7 [0] : vector<16x64xf32> to vector<64xf32>
    %11 = vector.shape_cast %10 : vector<64xf32> to vector<1x64xf32>
    %cst_8 = arith.constant dense<0.000000e+00> : vector<1x64xf32>
    %12 = tpu.matmul %8, %2, %cst_8 {dimension_numbers = #tpu.dot_dimension_numbers<[1], [0], [0], [1], [0, 0, 1, 1], [], []>} : vector<1x64xf32>, vector<64x64xf32>, vector<1x64xf32> -> vector<1x64xf32>
    %cst_9 = arith.constant dense<0.000000e+00> : vector<1x64xf32>
    %13 = tpu.matmul %11, %2, %cst_9 {dimension_numbers = #tpu.dot_dimension_numbers<[1], [0], [0], [1], [0, 0, 1, 1], [], []>} : vector<1x64xf32>, vector<64x64xf32>, vector<1x64xf32> -> vector<1x64xf32>
    %14 = arith.mulf %12, %12 : vector<1x64xf32>
    %15 = arith.subf %13, %14 : vector<1x64xf32>
    %cst_10 = arith.constant 9.99999974E-6 : f32
    %16 = vector.broadcast %cst_10 : f32 to vector<1x64xf32>
    %17 = arith.addf %15, %16 : vector<1x64xf32>
    %18 = math.rsqrt %17 : vector<1x64xf32>
    %19 = vector.broadcast %12 : vector<1x64xf32> to vector<16x64xf32>
    %20 = arith.subf %1, %19 : vector<16x64xf32>
    %21 = arith.mulf %5, %18 : vector<1x64xf32>
    %22 = vector.broadcast %21 : vector<1x64xf32> to vector<16x64xf32>
    %23 = arith.mulf %20, %22 : vector<16x64xf32>
    %24 = vector.broadcast %6 : vector<1x64xf32> to vector<16x64xf32>
    %25 = arith.addf %23, %24 : vector<16x64xf32>
    %cst_11 = arith.constant 0.000000e+00 : f32
    %26 = vector.broadcast %cst_11 : f32 to vector<16x64xf32>
    %27 = arith.maximumf %25, %26 : vector<16x64xf32>
    %c0_12 = arith.constant 0 : index
    %c0_13 = arith.constant 0 : index
    %c0_14 = arith.constant 0 : index
    %28 = vector.load %arg6[%c0_12, %c0_13, %c0_14] : memref<3x16x16xf32, #tpu.memory_space<vmem>>, vector<1x16x16xf32>
    %29 = vector.shape_cast %28 : vector<1x16x16xf32> to vector<16x16xf32>
    %cst_15 = arith.constant dense<0.000000e+00> : vector<16x64xf32>
    %30 = tpu.matmul %29, %27, %cst_15 {dimension_numbers = #tpu.dot_dimension_numbers<[1], [0], [0], [1], [0, 0, 1, 1], [], []>} : vector<16x16xf32>, vector<16x64xf32>, vector<16x64xf32> -> vector<16x64xf32>
    %c2 = arith.constant 2 : index
    %c0_16 = arith.constant 0 : index
    %c0_17 = arith.constant 0 : index
    %31 = vector.load %arg6[%c2, %c0_16, %c0_17] : memref<3x16x16xf32, #tpu.memory_space<vmem>>, vector<1x16x16xf32>
    %32 = vector.shape_cast %31 : vector<1x16x16xf32> to vector<16x16xf32>
    %cst_18 = arith.constant dense<0.000000e+00> : vector<16x64xf32>
    %33 = tpu.matmul %32, %27, %cst_18 {dimension_numbers = #tpu.dot_dimension_numbers<[1], [0], [0], [1], [0, 0, 1, 1], [], []>} : vector<16x16xf32>, vector<16x64xf32>, vector<16x64xf32> -> vector<16x64xf32>
    %c0_19 = arith.constant 0 : index
    %c0_20 = arith.constant 0 : index
    %c0_21 = arith.constant 0 : index
    %34 = vector.load %arg3[%c0_19, %c0_20, %c0_21] : memref<3x64x64xf32, #tpu.memory_space<vmem>>, vector<1x64x64xf32>
    %35 = vector.shape_cast %34 : vector<1x64x64xf32> to vector<64x64xf32>
    %cst_22 = arith.constant dense<0.000000e+00> : vector<16x64xf32>
    %36 = tpu.matmul %30, %35, %cst_22 {dimension_numbers = #tpu.dot_dimension_numbers<[1], [0], [0], [1], [0, 0, 1, 1], [], []>} : vector<16x64xf32>, vector<64x64xf32>, vector<16x64xf32> -> vector<16x64xf32>
    %c1 = arith.constant 1 : index
    %c0_23 = arith.constant 0 : index
    %c0_24 = arith.constant 0 : index
    %37 = vector.load %arg3[%c1, %c0_23, %c0_24] : memref<3x64x64xf32, #tpu.memory_space<vmem>>, vector<1x64x64xf32>
    %38 = vector.shape_cast %37 : vector<1x64x64xf32> to vector<64x64xf32>
    %cst_25 = arith.constant dense<0.000000e+00> : vector<16x64xf32>
    %39 = tpu.matmul %27, %38, %cst_25 {dimension_numbers = #tpu.dot_dimension_numbers<[1], [0], [0], [1], [0, 0, 1, 1], [], []>} : vector<16x64xf32>, vector<64x64xf32>, vector<16x64xf32> -> vector<16x64xf32>
    %40 = arith.addf %36, %39 : vector<16x64xf32>
    %c2_26 = arith.constant 2 : index
    %c0_27 = arith.constant 0 : index
    %c0_28 = arith.constant 0 : index
    %41 = vector.load %arg3[%c2_26, %c0_27, %c0_28] : memref<3x64x64xf32, #tpu.memory_space<vmem>>, vector<1x64x64xf32>
    %42 = vector.shape_cast %41 : vector<1x64x64xf32> to vector<64x64xf32>
    %cst_29 = arith.constant dense<0.000000e+00> : vector<16x64xf32>
    %43 = tpu.matmul %33, %42, %cst_29 {dimension_numbers = #tpu.dot_dimension_numbers<[1], [0], [0], [1], [0, 0, 1, 1], [], []>} : vector<16x64xf32>, vector<64x64xf32>, vector<16x64xf32> -> vector<16x64xf32>
    %44 = arith.addf %40, %43 : vector<16x64xf32>
    %45 = vector.extract_strided_slice %4 {offsets = [2, 0], sizes = [1, 64], strides = [1, 1]} : vector<4x64xf32> to vector<1x64xf32>
    %46 = vector.extract_strided_slice %4 {offsets = [3, 0], sizes = [1, 64], strides = [1, 1]} : vector<4x64xf32> to vector<1x64xf32>
    %cst_30 = arith.constant dense<0.000000e+00> : vector<64xf32>
    %47 = vector.multi_reduction <add>, %44, %cst_30 [0] : vector<16x64xf32> to vector<64xf32>
    %48 = vector.shape_cast %47 : vector<64xf32> to vector<1x64xf32>
    %49 = arith.mulf %44, %44 : vector<16x64xf32>
    %cst_31 = arith.constant dense<0.000000e+00> : vector<64xf32>
    %50 = vector.multi_reduction <add>, %49, %cst_31 [0] : vector<16x64xf32> to vector<64xf32>
    %51 = vector.shape_cast %50 : vector<64xf32> to vector<1x64xf32>
    %cst_32 = arith.constant dense<0.000000e+00> : vector<1x64xf32>
    %52 = tpu.matmul %48, %2, %cst_32 {dimension_numbers = #tpu.dot_dimension_numbers<[1], [0], [0], [1], [0, 0, 1, 1], [], []>} : vector<1x64xf32>, vector<64x64xf32>, vector<1x64xf32> -> vector<1x64xf32>
    %cst_33 = arith.constant dense<0.000000e+00> : vector<1x64xf32>
    %53 = tpu.matmul %51, %2, %cst_33 {dimension_numbers = #tpu.dot_dimension_numbers<[1], [0], [0], [1], [0, 0, 1, 1], [], []>} : vector<1x64xf32>, vector<64x64xf32>, vector<1x64xf32> -> vector<1x64xf32>
    %54 = arith.mulf %52, %52 : vector<1x64xf32>
    %55 = arith.subf %53, %54 : vector<1x64xf32>
    %cst_34 = arith.constant 9.99999974E-6 : f32
    %56 = vector.broadcast %cst_34 : f32 to vector<1x64xf32>
    %57 = arith.addf %55, %56 : vector<1x64xf32>
    %58 = math.rsqrt %57 : vector<1x64xf32>
    %59 = vector.broadcast %52 : vector<1x64xf32> to vector<16x64xf32>
    %60 = arith.subf %44, %59 : vector<16x64xf32>
    %61 = arith.mulf %45, %58 : vector<1x64xf32>
    %62 = vector.broadcast %61 : vector<1x64xf32> to vector<16x64xf32>
    %63 = arith.mulf %60, %62 : vector<16x64xf32>
    %64 = vector.broadcast %46 : vector<1x64xf32> to vector<16x64xf32>
    %65 = arith.addf %63, %64 : vector<16x64xf32>
    %cst_35 = arith.constant 0.000000e+00 : f32
    %66 = vector.broadcast %cst_35 : f32 to vector<16x64xf32>
    %67 = arith.maximumf %65, %66 : vector<16x64xf32>
    %c0_36 = arith.constant 0 : index
    %c0_37 = arith.constant 0 : index
    %c0_38 = arith.constant 0 : index
    %68 = vector.load %arg7[%c0_36, %c0_37, %c0_38] : memref<3x8x16xf32, #tpu.memory_space<vmem>>, vector<1x8x16xf32>
    %69 = vector.shape_cast %68 : vector<1x8x16xf32> to vector<8x16xf32>
    %cst_39 = arith.constant dense<0.000000e+00> : vector<8x64xf32>
    %70 = tpu.matmul %69, %67, %cst_39 {dimension_numbers = #tpu.dot_dimension_numbers<[1], [0], [0], [1], [0, 0, 1, 1], [], []>} : vector<8x16xf32>, vector<16x64xf32>, vector<8x64xf32> -> vector<8x64xf32>
    %c0_40 = arith.constant 0 : index
    %c0_41 = arith.constant 0 : index
    %c0_42 = arith.constant 0 : index
    %71 = vector.load %arg4[%c0_40, %c0_41, %c0_42] : memref<3x64x64xf32, #tpu.memory_space<vmem>>, vector<1x64x64xf32>
    %72 = vector.shape_cast %71 : vector<1x64x64xf32> to vector<64x64xf32>
    %cst_43 = arith.constant dense<0.000000e+00> : vector<8x64xf32>
    %73 = tpu.matmul %70, %72, %cst_43 {dimension_numbers = #tpu.dot_dimension_numbers<[1], [0], [0], [1], [0, 0, 1, 1], [], []>} : vector<8x64xf32>, vector<64x64xf32>, vector<8x64xf32> -> vector<8x64xf32>
    %c1_44 = arith.constant 1 : index
    %c0_45 = arith.constant 0 : index
    %c0_46 = arith.constant 0 : index
    %74 = vector.load %arg7[%c1_44, %c0_45, %c0_46] : memref<3x8x16xf32, #tpu.memory_space<vmem>>, vector<1x8x16xf32>
    %75 = vector.shape_cast %74 : vector<1x8x16xf32> to vector<8x16xf32>
    %cst_47 = arith.constant dense<0.000000e+00> : vector<8x64xf32>
    %76 = tpu.matmul %75, %67, %cst_47 {dimension_numbers = #tpu.dot_dimension_numbers<[1], [0], [0], [1], [0, 0, 1, 1], [], []>} : vector<8x16xf32>, vector<16x64xf32>, vector<8x64xf32> -> vector<8x64xf32>
    %c1_48 = arith.constant 1 : index
    %c0_49 = arith.constant 0 : index
    %c0_50 = arith.constant 0 : index
    %77 = vector.load %arg4[%c1_48, %c0_49, %c0_50] : memref<3x64x64xf32, #tpu.memory_space<vmem>>, vector<1x64x64xf32>
    %78 = vector.shape_cast %77 : vector<1x64x64xf32> to vector<64x64xf32>
    %cst_51 = arith.constant dense<0.000000e+00> : vector<8x64xf32>
    %79 = tpu.matmul %76, %78, %cst_51 {dimension_numbers = #tpu.dot_dimension_numbers<[1], [0], [0], [1], [0, 0, 1, 1], [], []>} : vector<8x64xf32>, vector<64x64xf32>, vector<8x64xf32> -> vector<8x64xf32>
    %80 = arith.addf %73, %79 : vector<8x64xf32>
    %c2_52 = arith.constant 2 : index
    %c0_53 = arith.constant 0 : index
    %c0_54 = arith.constant 0 : index
    %81 = vector.load %arg7[%c2_52, %c0_53, %c0_54] : memref<3x8x16xf32, #tpu.memory_space<vmem>>, vector<1x8x16xf32>
    %82 = vector.shape_cast %81 : vector<1x8x16xf32> to vector<8x16xf32>
    %cst_55 = arith.constant dense<0.000000e+00> : vector<8x64xf32>
    %83 = tpu.matmul %82, %67, %cst_55 {dimension_numbers = #tpu.dot_dimension_numbers<[1], [0], [0], [1], [0, 0, 1, 1], [], []>} : vector<8x16xf32>, vector<16x64xf32>, vector<8x64xf32> -> vector<8x64xf32>
    %c2_56 = arith.constant 2 : index
    %c0_57 = arith.constant 0 : index
    %c0_58 = arith.constant 0 : index
    %84 = vector.load %arg4[%c2_56, %c0_57, %c0_58] : memref<3x64x64xf32, #tpu.memory_space<vmem>>, vector<1x64x64xf32>
    %85 = vector.shape_cast %84 : vector<1x64x64xf32> to vector<64x64xf32>
    %cst_59 = arith.constant dense<0.000000e+00> : vector<8x64xf32>
    %86 = tpu.matmul %83, %85, %cst_59 {dimension_numbers = #tpu.dot_dimension_numbers<[1], [0], [0], [1], [0, 0, 1, 1], [], []>} : vector<8x64xf32>, vector<64x64xf32>, vector<8x64xf32> -> vector<8x64xf32>
    %87 = arith.addf %80, %86 : vector<8x64xf32>
    %c1_60 = arith.constant 1 : index
    %c0_61 = arith.constant 0 : index
    %c0_62 = arith.constant 0 : index
    %88 = vector.load %arg7[%c1_60, %c0_61, %c0_62] : memref<3x8x16xf32, #tpu.memory_space<vmem>>, vector<1x8x16xf32>
    %89 = vector.shape_cast %88 : vector<1x8x16xf32> to vector<8x16xf32>
    %cst_63 = arith.constant dense<0.000000e+00> : vector<8x64xf32>
    %90 = tpu.matmul %89, %1, %cst_63 {dimension_numbers = #tpu.dot_dimension_numbers<[1], [0], [0], [1], [0, 0, 1, 1], [], []>} : vector<8x16xf32>, vector<16x64xf32>, vector<8x64xf32> -> vector<8x64xf32>
    %c0_64 = arith.constant 0 : index
    %c0_65 = arith.constant 0 : index
    %91 = vector.load %arg8[%c0_64, %c0_65] : memref<64x64xf32, #tpu.memory_space<vmem>>, vector<64x64xf32>
    %cst_66 = arith.constant dense<0.000000e+00> : vector<8x64xf32>
    %92 = tpu.matmul %90, %91, %cst_66 {dimension_numbers = #tpu.dot_dimension_numbers<[1], [0], [0], [1], [0, 0, 1, 1], [], []>} : vector<8x64xf32>, vector<64x64xf32>, vector<8x64xf32> -> vector<8x64xf32>
    %93 = arith.addf %87, %92 : vector<8x64xf32>
    %c0_67 = arith.constant 0 : index
    %c0_68 = arith.constant 0 : index
    %94 = vector.load %arg9[%c0_67, %c0_68] : memref<1x64xf32, #tpu.memory_space<vmem>>, vector<1x64xf32>
    %95 = vector.broadcast %94 : vector<1x64xf32> to vector<8x64xf32>
    %96 = arith.addf %93, %95 : vector<8x64xf32>
    %c0_69 = arith.constant 0 : index
    %c0_70 = arith.constant 0 : index
    %c0_71 = arith.constant 0 : index
    %97 = vector.load %arg10[%c0_69, %c0_70, %c0_71] : memref<1x8x64xf32, #tpu.memory_space<vmem>>, vector<1x8x64xf32>
    %98 = vector.shape_cast %97 : vector<1x8x64xf32> to vector<8x64xf32>
    %99 = vector.shape_cast %96 : vector<8x64xf32> to vector<1x8x64xf32>
    tpu.vector_store %arg10[%c0_69, %c0_70, %c0_71], %99 {strides = array<i32>} : memref<1x8x64xf32, #tpu.memory_space<vmem>>, vector<1x8x64xf32>,
    return
  }
  func.func @transform_0(%arg0: i32) -> (i32, i32, i32) {
    %c0_i32 = arith.constant 0 : i32
    %c0_i32_0 = arith.constant 0 : i32
    %c0_i32_1 = arith.constant 0 : i32
    return %arg0, %c0_i32, %c0_i32_0 : i32, i32, i32
  }
  func.func @transform_1(%arg0: i32) -> (i32, i32, i32) {
    %c0_i32 = arith.constant 0 : i32
    %c0_i32_0 = arith.constant 0 : i32
    %c0_i32_1 = arith.constant 0 : i32
    return %arg0, %c0_i32, %c0_i32_0 : i32, i32, i32
  }
  func.func @transform_2(%arg0: i32) -> (i32, i32, i32) {
    %c0_i32 = arith.constant 0 : i32
    %c0_i32_0 = arith.constant 0 : i32
    %c0_i32_1 = arith.constant 0 : i32
    %c0_i32_2 = arith.constant 0 : i32
    return %c0_i32, %c0_i32_0, %c0_i32_1 : i32, i32, i32
  }
  func.func @transform_3(%arg0: i32) -> (i32, i32, i32) {
    %c0_i32 = arith.constant 0 : i32
    %c0_i32_0 = arith.constant 0 : i32
    %c0_i32_1 = arith.constant 0 : i32
    %c0_i32_2 = arith.constant 0 : i32
    return %c0_i32, %c0_i32_0, %c0_i32_1 : i32, i32, i32
  }
  func.func @transform_4(%arg0: i32) -> (i32, i32) {
    %c0_i32 = arith.constant 0 : i32
    %c0_i32_0 = arith.constant 0 : i32
    %c0_i32_1 = arith.constant 0 : i32
    return %c0_i32, %c0_i32_0 : i32, i32
  }
  func.func @transform_5(%arg0: i32) -> (i32, i32, i32) {
    %c0_i32 = arith.constant 0 : i32
    %c0_i32_0 = arith.constant 0 : i32
    %c0_i32_1 = arith.constant 0 : i32
    %c0_i32_2 = arith.constant 0 : i32
    return %c0_i32, %c0_i32_0, %c0_i32_1 : i32, i32, i32
  }
  func.func @transform_6(%arg0: i32) -> (i32, i32, i32) {
    %c0_i32 = arith.constant 0 : i32
    %c0_i32_0 = arith.constant 0 : i32
    %c0_i32_1 = arith.constant 0 : i32
    %c0_i32_2 = arith.constant 0 : i32
    return %c0_i32, %c0_i32_0, %c0_i32_1 : i32, i32, i32
  }
  func.func @transform_7(%arg0: i32) -> (i32, i32) {
    %c0_i32 = arith.constant 0 : i32
    %c0_i32_0 = arith.constant 0 : i32
    %c0_i32_1 = arith.constant 0 : i32
    return %c0_i32, %c0_i32_0 : i32, i32
  }
  func.func @transform_8(%arg0: i32) -> (i32, i32) {
    %c0_i32 = arith.constant 0 : i32
    %c0_i32_0 = arith.constant 0 : i32
    %c0_i32_1 = arith.constant 0 : i32
    return %c0_i32, %c0_i32_0 : i32, i32
  }
  func.func @transform_9(%arg0: i32) -> (i32, i32, i32) {
    %c0_i32 = arith.constant 0 : i32
    %c0_i32_0 = arith.constant 0 : i32
    %c0_i32_1 = arith.constant 0 : i32
    return %arg0, %c0_i32, %c0_i32_0 : i32, i32, i32
  }
}

</mosaic_0001>

<llo_original>
// kernel: con_down_residual_block.1
$region0: #{con_down_residual_block.1}
  #allocation0 [shape = 'u32[]', space=smem, size = 0x4, offset = 0x4, fixed_abs, tag = 'smem constant byte address 0x4 - core index']
  #allocation1 [shape = 'u32[144,128]{1,0:T(1,128)}', space=vmem, size = 0x12000, scoped, tag = 'internal scratch']
  %s0 = inlined_call_operand.vmem [shape: f32[2,16,64], index: 0, kind: input, shape index: {}]
  %s1 = inlined_call_operand.vmem [shape: f32[2,4,64], index: 1, kind: input, shape index: {}]
  %s2 = inlined_call_operand.vmem [shape: f32[3,64,64], index: 2, kind: input, shape index: {}]
  %s3 = inlined_call_operand.vmem [shape: f32[3,64,64], index: 3, kind: input, shape index: {}]
  %s4 = inlined_call_operand.hbm [shape: f32[64,64], index: 4, kind: input, shape index: {}]
  %s5 = inlined_call_operand.vmem [shape: f32[3,16,16], index: 5, kind: input, shape index: {}]
  %s6 = inlined_call_operand.hbm [shape: f32[3,8,16], index: 6, kind: input, shape index: {}]
  %s7 = inlined_call_operand.hbm [shape: f32[64,64], index: 7, kind: input, shape index: {}]
  %s8 = inlined_call_operand.vmem [shape: f32[1,64], index: 8, kind: input, shape index: {}]
  %s9 = inlined_call_operand.vmem [shape: f32[2,8,64], index: 9, kind: output, shape index: {}]
  %s10 = sld [smem:[#allocation0]]
  $region81: #{con_down_residual_block.1} parent=0
    _
  %s12 = ssub.s32 1, %s10
  %s13 = scalar_select 0, %s12, %s10
  $region1: #{con_down_residual_block.1} parent=0
    #allocation2 [shape = 'u8[32768]{0}', space=vmem, size = 0x8000, scoped, tag = 'input window, operand 4, single buffered']
    #allocation3 [shape = 's32[2]{0}', space=sflag, size = 0x8, scoped, tag = 'scoped memory for con_down_residual_block.1']
    #allocation4 [shape = 'u8[12288]{0}', space=vmem, size = 0x3000, scoped, tag = 'input window, operand 6, single buffered']
    #allocation5 [shape = 's32[1]{0}', space=sflag, size = 0x4, scoped, tag = 'scoped memory for con_down_residual_block.1']
    #allocation6 [shape = 'u8[32768]{0}', space=vmem, size = 0x8000, scoped, tag = 'input window, operand 7, single buffered']
    %14 = vsyncpa [#allocation3], 0
    %15 = vsyncpa [#allocation5], 0
    loop: start=0, step=1, limit=4
    $region2: #{con_down_residual_block.1} parent=1 // loop_pre_header
      _
    $region3: #{con_down_residual_block.1} parent=1 // loop_header
      %s17 = sphi 0, %s21
      %p18 = scmp.ge.s32.totalorder %s17, 4
      %s27 = sphi 0, %s29
      %s30 = sphi 0, %s27
      %s31 = sphi 0, %s30
      %s47 = sphi 0, %s31
      %s53 = sphi 0, %s55
      %s56 = sphi 0, %s53
      %s57 = sphi 0, %s56
      %s73 = sphi 0, %s57
      %s77 = sphi 0, %s77
      %s79 = sphi 0, %s77
      %s80 = sphi 0, %s79
      %s94 = sphi 0, %s80
      %s98 = sphi 0, %s98
      %s100 = sphi 0, %s98
      %s101 = sphi 0, %s100
      %s115 = sphi 0, %s101
      %s119 = sphi 0, %s119
      %s121 = sphi 0, %s119
      %s122 = sphi 0, %s121
      %s136 = sphi 0, %s122
      %s140 = sphi 0, %s140
      %s142 = sphi 0, %s140
      %s143 = sphi 0, %s142
      %s157 = sphi 0, %s143
      %s161 = sphi 0, %s161
      %s163 = sphi 0, %s161
      %s164 = sphi 0, %s163
      %s178 = sphi 0, %s164
      %s182 = sphi 0, %s182
      %s184 = sphi 0, %s182
      %s185 = sphi 0, %s184
      %s199 = sphi 0, %s185
      %s203 = sphi 0, %s203
      %s205 = sphi 0, %s203
      %s206 = sphi 0, %s205
      %s220 = sphi 0, %s206
      %s226 = sphi 0, %s228
      %s229 = sphi 0, %s226
      %s230 = sphi 0, %s229
      %s246 = sphi 0, %s230
    $region4: #{con_down_residual_block.1} parent=1 // loop_header_branch
      %20 = sbr.rel (%p18) target = $region8
    $region5: #{con_down_residual_block.1} parent=1 // loop_body
      %s22 = ssub.s32 %s17, 1
      %s23 = ssub.s32 %s17, 2
      %s24 = sadd.s32 %s17, 1
      %s25 = ssub.s32 %s17, %s24
      %p26 = scmp.eq.s32.totalorder %s25, 0
      %s28 = sadd.s32 %s27, 1
      %s29 = scalar_select %p26, %s27, %s28
      %p32 = pneg %p26
      %p33 = scmp.eq.s32.totalorder %s17, 1
      %p34 = por %p32, %p33
      %p35 = scmp.ne.s32.totalorder %s27, %s30
      %p36 = scmp.eq.s32.totalorder %s17, 0
      %p37 = por %p35, %p36
      %p38 = scmp.ne.s32.totalorder %s27, %s30
      %p39 = scmp.eq.s32.totalorder %s22, 1
      %p40 = por %p38, %p39
      %p41 = scmp.ne.s32.totalorder %s30, %s31
      %p42 = scmp.eq.s32.totalorder %s22, 0
      %p43 = por %p41, %p42
      %p44 = scmp.ne.s32.totalorder %s30, %s31
      %p45 = scmp.eq.s32.totalorder %s23, 1
      %p46 = por %p44, %p45
      %p48 = scmp.ne.s32.totalorder %s31, %s47
      %p49 = scmp.eq.s32.totalorder %s23, 0
      %p50 = por %p48, %p49
      %s51 = ssub.s32 %s17, %s24
      %p52 = scmp.eq.s32.totalorder %s51, 0
      %s54 = sadd.s32 %s53, 1
      %s55 = scalar_select %p52, %s53, %s54
      %p58 = pneg %p52
      %p59 = scmp.eq.s32.totalorder %s17, 1
      %p60 = por %p58, %p59
      %p61 = scmp.ne.s32.totalorder %s53, %s56
      %p62 = scmp.eq.s32.totalorder %s17, 0
      %p63 = por %p61, %p62
      %p64 = scmp.ne.s32.totalorder %s53, %s56
      %p65 = scmp.eq.s32.totalorder %s22, 1
      %p66 = por %p64, %p65
      %p67 = scmp.ne.s32.totalorder %s56, %s57
      %p68 = scmp.eq.s32.totalorder %s22, 0
      %p69 = por %p67, %p68
      %p70 = scmp.ne.s32.totalorder %s56, %s57
      %p71 = scmp.eq.s32.totalorder %s23, 1
      %p72 = por %p70, %p71
      %p74 = scmp.ne.s32.totalorder %s57, %s73
      %p75 = scmp.eq.s32.totalorder %s23, 0
      %p76 = por %p74, %p75
      %s78 = sadd.s32 %s77, 1
      %p81 = scmp.eq.s32.totalorder %s17, 1
      %p82 = scmp.ne.s32.totalorder %s77, %s79
      %p83 = scmp.eq.s32.totalorder %s17, 0
      %p84 = por %p82, %p83
      %p85 = scmp.ne.s32.totalorder %s77, %s79
      %p86 = scmp.eq.s32.totalorder %s22, 1
      %p87 = por %p85, %p86
      %p88 = scmp.ne.s32.totalorder %s79, %s80
      %p89 = scmp.eq.s32.totalorder %s22, 0
      %p90 = por %p88, %p89
      %p91 = scmp.ne.s32.totalorder %s79, %s80
      %p92 = scmp.eq.s32.totalorder %s23, 1
      %p93 = por %p91, %p92
      %p95 = scmp.ne.s32.totalorder %s80, %s94
      %p96 = scmp.eq.s32.totalorder %s23, 0
      %p97 = por %p95, %p96
      %s99 = sadd.s32 %s98, 1
      %p102 = scmp.eq.s32.totalorder %s17, 1
      %p103 = scmp.ne.s32.totalorder %s98, %s100
      %p104 = scmp.eq.s32.totalorder %s17, 0
      %p105 = por %p103, %p104
      %p106 = scmp.ne.s32.totalorder %s98, %s100
      %p107 = scmp.eq.s32.totalorder %s22, 1
      %p108 = por %p106, %p107
      %p109 = scmp.ne.s32.totalorder %s100, %s101
      %p110 = scmp.eq.s32.totalorder %s22, 0
      %p111 = por %p109, %p110
      %p112 = scmp.ne.s32.totalorder %s100, %s101
      %p113 = scmp.eq.s32.totalorder %s23, 1
      %p114 = por %p112, %p113
      %p116 = scmp.ne.s32.totalorder %s101, %s115
      %p117 = scmp.eq.s32.totalorder %s23, 0
      %p118 = por %p116, %p117
      %s120 = sadd.s32 %s119, 1
      %p123 = scmp.eq.s32.totalorder %s17, 1
      %p124 = scmp.ne.s32.totalorder %s119, %s121
      %p125 = scmp.eq.s32.totalorder %s17, 0
      %p126 = por %p124, %p125
      %p127 = scmp.ne.s32.totalorder %s119, %s121
      %p128 = scmp.eq.s32.totalorder %s22, 1
      %p129 = por %p127, %p128
      %p130 = scmp.ne.s32.totalorder %s121, %s122
      %p131 = scmp.eq.s32.totalorder %s22, 0
      %p132 = por %p130, %p131
      %p133 = scmp.ne.s32.totalorder %s121, %s122
      %p134 = scmp.eq.s32.totalorder %s23, 1
      %p135 = por %p133, %p134
      %p137 = scmp.ne.s32.totalorder %s122, %s136
      %p138 = scmp.eq.s32.totalorder %s23, 0
      %p139 = por %p137, %p138
      %s141 = sadd.s32 %s140, 1
      %p144 = scmp.eq.s32.totalorder %s17, 1
      %p145 = scmp.ne.s32.totalorder %s140, %s142
      %p146 = scmp.eq.s32.totalorder %s17, 0
      %p147 = por %p145, %p146
      %p148 = scmp.ne.s32.totalorder %s140, %s142
      %p149 = scmp.eq.s32.totalorder %s22, 1
      %p150 = por %p148, %p149
      %p151 = scmp.ne.s32.totalorder %s142, %s143
      %p152 = scmp.eq.s32.totalorder %s22, 0
      %p153 = por %p151, %p152
      %p154 = scmp.ne.s32.totalorder %s142, %s143
      %p155 = scmp.eq.s32.totalorder %s23, 1
      %p156 = por %p154, %p155
      %p158 = scmp.ne.s32.totalorder %s143, %s157
      %p159 = scmp.eq.s32.totalorder %s23, 0
      %p160 = por %p158, %p159
      %s162 = sadd.s32 %s161, 1
      %p165 = scmp.eq.s32.totalorder %s17, 1
      %p166 = scmp.ne.s32.totalorder %s161, %s163
      %p167 = scmp.eq.s32.totalorder %s17, 0
      %p168 = por %p166, %p167
      %p169 = scmp.ne.s32.totalorder %s161, %s163
      %p170 = scmp.eq.s32.totalorder %s22, 1
      %p171 = por %p169, %p170
      %p172 = scmp.ne.s32.totalorder %s163, %s164
      %p173 = scmp.eq.s32.totalorder %s22, 0
      %p174 = por %p172, %p173
      %p175 = scmp.ne.s32.totalorder %s163, %s164
      %p176 = scmp.eq.s32.totalorder %s23, 1
      %p177 = por %p175, %p176
      %p179 = scmp.ne.s32.totalorder %s164, %s178
      %p180 = scmp.eq.s32.totalorder %s23, 0
      %p181 = por %p179, %p180
      %s183 = sadd.s32 %s182, 1
      %p186 = scmp.eq.s32.totalorder %s17, 1
      %p187 = scmp.ne.s32.totalorder %s182, %s184
      %p188 = scmp.eq.s32.totalorder %s17, 0
      %p189 = por %p187, %p188
      %p190 = scmp.ne.s32.totalorder %s182, %s184
      %p191 = scmp.eq.s32.totalorder %s22, 1
      %p192 = por %p190, %p191
      %p193 = scmp.ne.s32.totalorder %s184, %s185
      %p194 = scmp.eq.s32.totalorder %s22, 0
      %p195 = por %p193, %p194
      %p196 = scmp.ne.s32.totalorder %s184, %s185
      %p197 = scmp.eq.s32.totalorder %s23, 1
      %p198 = por %p196, %p197
      %p200 = scmp.ne.s32.totalorder %s185, %s199
      %p201 = scmp.eq.s32.totalorder %s23, 0
      %p202 = por %p200, %p201
      %s204 = sadd.s32 %s203, 1
      %p207 = scmp.eq.s32.totalorder %s17, 1
      %p208 = scmp.ne.s32.totalorder %s203, %s205
      %p209 = scmp.eq.s32.totalorder %s17, 0
      %p210 = por %p208, %p209
      %p211 = scmp.ne.s32.totalorder %s203, %s205
      %p212 = scmp.eq.s32.totalorder %s22, 1
      %p213 = por %p211, %p212
      %p214 = scmp.ne.s32.totalorder %s205, %s206
      %p215 = scmp.eq.s32.totalorder %s22, 0
      %p216 = por %p214, %p215
      %p217 = scmp.ne.s32.totalorder %s205, %s206
      %p218 = scmp.eq.s32.totalorder %s23, 1
      %p219 = por %p217, %p218
      %p221 = scmp.ne.s32.totalorder %s206, %s220
      %p222 = scmp.eq.s32.totalorder %s23, 0
      %p223 = por %p221, %p222
      %s224 = ssub.s32 %s17, %s24
      %p225 = scmp.eq.s32.totalorder %s224, 0
      %s227 = sadd.s32 %s226, 1
      %s228 = scalar_select %p225, %s226, %s227
      %p231 = pneg %p225
      %p232 = scmp.eq.s32.totalorder %s17, 1
      %p233 = por %p231, %p232
      %p234 = scmp.ne.s32.totalorder %s226, %s229
      %p235 = scmp.eq.s32.totalorder %s17, 0
      %p236 = por %p234, %p235
      %p237 = scmp.ne.s32.totalorder %s226, %s229
      %p238 = scmp.eq.s32.totalorder %s22, 1
      %p239 = por %p237, %p238
      %p240 = scmp.ne.s32.totalorder %s229, %s230
      %p241 = scmp.eq.s32.totalorder %s22, 0
      %p242 = por %p240, %p241
      %p243 = scmp.ne.s32.totalorder %s229, %s230
      %p244 = scmp.eq.s32.totalorder %s23, 1
      %p245 = por %p243, %p244
      %p247 = scmp.ne.s32.totalorder %s230, %s246
      %p248 = scmp.eq.s32.totalorder %s23, 0
      %p249 = por %p247, %p248
      %p250 = scmp.le.s32.totalorder 1, %s17
      %p251 = scmp.lt.s32.totalorder %s17, 3
      %p252 = pnand %p250, %p251
      %p253 = pneg %p252
      // Predicated region
      $region9: #{con_down_residual_block.1} parent=5 // pred_check
        _
      $region10: #{con_down_residual_block.1} parent=5 // pred_check_branch
        %255 = sbr.rel (%p252) target = $region12
      $region11: #{con_down_residual_block.1} parent=5 // pred_region
        %s256 = ssub.s32 %s17, 1
        // Predicated region
        $region13: #{con_down_residual_block.1} parent=11 // pred_check
          %p257 = pneg %p90
        $region14: #{con_down_residual_block.1} parent=11 // pred_check_branch
          %259 = sbr.rel (%p257) target = $region16
        $region15: #{con_down_residual_block.1} parent=11 // pred_region
          _
        $region16: #{con_down_residual_block.1} parent=11 // pred_fallthru
          _
        // Predicated region
        $region17: #{con_down_residual_block.1} parent=11 // pred_check
          %p260 = pneg %p111
        $region18: #{con_down_residual_block.1} parent=11 // pred_check_branch
          %262 = sbr.rel (%p260) target = $region20
        $region19: #{con_down_residual_block.1} parent=11 // pred_region
          _
        $region20: #{con_down_residual_block.1} parent=11 // pred_fallthru
          _
        // Predicated region
        $region21: #{con_down_residual_block.1} parent=11 // pred_check
          %p263 = pneg %p132
        $region22: #{con_down_residual_block.1} parent=11 // pred_check_branch
          %265 = sbr.rel (%p263) target = $region24
        $region23: #{con_down_residual_block.1} parent=11 // pred_region
          %s267 = ssub.s32 1024, 1024
          %268 = vsyncadd [#allocation3], %s267
          %s269 = sshll.u32 [#allocation2], 4
          %s270 = int_to_ptr.vmem [resolvable:$true] %s269
          %275 = dma.hbm_to_vmem [thread:$0]  %s4, 1024, %s270, [#allocation3], 128, 128, 8
        $region24: #{con_down_residual_block.1} parent=11 // pred_fallthru
          _
        // Predicated region
        $region25: #{con_down_residual_block.1} parent=11 // pred_check
          %p276 = pneg %p153
        $region26: #{con_down_residual_block.1} parent=11 // pred_check_branch
          %278 = sbr.rel (%p276) target = $region28
        $region27: #{con_down_residual_block.1} parent=11 // pred_region
          _
        $region28: #{con_down_residual_block.1} parent=11 // pred_fallthru
          _
        // Predicated region
        $region29: #{con_down_residual_block.1} parent=11 // pred_check
          %p279 = pneg %p174
        $region30: #{con_down_residual_block.1} parent=11 // pred_check_branch
          %281 = sbr.rel (%p279) target = $region32
        $region31: #{con_down_residual_block.1} parent=11 // pred_region
          %s283 = ssub.s32 384, 384
          %284 = vsyncadd [#allocation5], %s283
          %s285 = sshll.u32 [#allocation4], 4
          %s286 = int_to_ptr.vmem [resolvable:$true] %s285
          %291 = dma.hbm_to_vmem [thread:$0]  %s6, 384, %s286, [#allocation5], 128, 128, 8
        $region32: #{con_down_residual_block.1} parent=11 // pred_fallthru
          _
        // Predicated region
        $region33: #{con_down_residual_block.1} parent=11 // pred_check
          %p292 = pneg %p195
        $region34: #{con_down_residual_block.1} parent=11 // pred_check_branch
          %294 = sbr.rel (%p292) target = $region36
        $region35: #{con_down_residual_block.1} parent=11 // pred_region
          %s296 = ssub.s32 1024, 1024
          %297 = vsyncadd [#allocation5], %s296
          %s298 = sshll.u32 [#allocation6], 4
          %s299 = int_to_ptr.vmem [resolvable:$true] %s298
          %304 = dma.hbm_to_vmem [thread:$0]  %s7, 1024, %s299, [#allocation5], 128, 128, 8
        $region36: #{con_down_residual_block.1} parent=11 // pred_fallthru
          _
        // Predicated region
        $region37: #{con_down_residual_block.1} parent=11 // pred_check
          %p305 = pneg %p216
        $region38: #{con_down_residual_block.1} parent=11 // pred_check_branch
          %307 = sbr.rel (%p305) target = $region40
        $region39: #{con_down_residual_block.1} parent=11 // pred_region
          _
        $region40: #{con_down_residual_block.1} parent=11 // pred_fallthru
          _
      $region12: #{con_down_residual_block.1} parent=5 // pred_fallthru
        _
      %p308 = scmp.lt.s32.totalorder %s17, 2
      // Predicated region
      $region41: #{con_down_residual_block.1} parent=5 // pred_check
        %p309 = pneg %p308
      $region42: #{con_down_residual_block.1} parent=5 // pred_check_branch
        %311 = sbr.rel (%p309) target = $region44
      $region43: #{con_down_residual_block.1} parent=5 // pred_region
        // Predicated region
        $region45: #{con_down_residual_block.1} parent=43 // pred_check
          %p312 = pneg %p37
        $region46: #{con_down_residual_block.1} parent=43 // pred_check_branch
          %314 = sbr.rel (%p312) target = $region48
        $region47: #{con_down_residual_block.1} parent=43 // pred_region
          %p315 = scmp.lt.s32.totalorder %s17, 1
          %s316 = scalar_select %p315, %s17, 1
          %s317 = smul.addr %s316, 2
          %s318 = smul.addr %s317, 8
          %s319 = scalar_lea.vmem %s0, %s318
        $region48: #{con_down_residual_block.1} parent=43 // pred_fallthru
          _
        // Predicated region
        $region49: #{con_down_residual_block.1} parent=43 // pred_check
          %p320 = pneg %p63
        $region50: #{con_down_residual_block.1} parent=43 // pred_check_branch
          %322 = sbr.rel (%p320) target = $region52
        $region51: #{con_down_residual_block.1} parent=43 // pred_region
          %p323 = scmp.lt.s32.totalorder %s17, 1
          %s324 = scalar_select %p323, %s17, 1
          %s325 = smul.addr %s324, 4
          %s326 = scalar_lea.vmem %s1, %s325
        $region52: #{con_down_residual_block.1} parent=43 // pred_fallthru
          _
      $region44: #{con_down_residual_block.1} parent=5 // pred_fallthru
        _
      %p327 = scmp.le.s32.totalorder 1, %s17
      %p328 = scmp.lt.s32.totalorder %s17, 3
      %p329 = pnand %p327, %p328
      %p330 = pneg %p329
      // Predicated region
      $region53: #{con_down_residual_block.1} parent=5 // pred_check
        _
      $region54: #{con_down_residual_block.1} parent=5 // pred_check_branch
        %332 = sbr.rel (%p329) target = $region56
      $region55: #{con_down_residual_block.1} parent=5 // pred_region
        %s333 = ssub.s32 %s17, 1
        // Predicated region
        $region57: #{con_down_residual_block.1} parent=55 // pred_check
          %p334 = pneg %p132
        $region58: #{con_down_residual_block.1} parent=55 // pred_check_branch
          %336 = sbr.rel (%p334) target = $region60
        $region59: #{con_down_residual_block.1} parent=55 // pred_region
          %337 = dma.done [#allocation3], 1024
        $region60: #{con_down_residual_block.1} parent=55 // pred_fallthru
          _
        // Predicated region
        $region61: #{con_down_residual_block.1} parent=55 // pred_check
          %p338 = pneg %p174
        $region62: #{con_down_residual_block.1} parent=55 // pred_check_branch
          %340 = sbr.rel (%p338) target = $region64
        $region63: #{con_down_residual_block.1} parent=55 // pred_region
          %341 = dma.done [#allocation5], 384
        $region64: #{con_down_residual_block.1} parent=55 // pred_fallthru
          _
        // Predicated region
        $region65: #{con_down_residual_block.1} parent=55 // pred_check
          %p342 = pneg %p195
        $region66: #{con_down_residual_block.1} parent=55 // pred_check_branch
          %344 = sbr.rel (%p342) target = $region68
        $region67: #{con_down_residual_block.1} parent=55 // pred_region
          %345 = dma.done [#allocation5], 1024
        $region68: #{con_down_residual_block.1} parent=55 // pred_fallthru
          _
        %p346 = scmp.lt.s32.totalorder %s22, 1
        %s347 = scalar_select %p346, %s22, 1
        %s348 = smul.addr %s347, 2
        %s349 = smul.addr %s348, 8
        %s350 = scalar_lea.vmem %s0, %s349
        %p351 = pneg %p43
        %p352 = pneg %p40
        %p353 = scmp.lt.s32.totalorder %s22, 1
        %s354 = scalar_select %p353, %s22, 1
        %s355 = smul.addr %s354, 4
        %s356 = scalar_lea.vmem %s1, %s355
        %p357 = pneg %p69
        %p358 = pneg %p66
        %p359 = pneg %p90
        %p360 = pneg %p87
        %p361 = pneg %p111
        %p362 = pneg %p108
        %p363 = pneg %p132
        %p364 = pneg %p129
        %p365 = pneg %p153
        %p366 = pneg %p150
        %p367 = pneg %p174
        %p368 = pneg %p171
        %p369 = pneg %p195
        %p370 = pneg %p192
        %p371 = pneg %p216
        %p372 = pneg %p213
        %p373 = pneg %p242
        %p374 = pneg %p239
        %p375 = scmp.lt.s32.totalorder %s22, 1
        %s376 = scalar_select %p375, %s22, 1
        %s377 = smul.addr %s376, 8
        %s378 = scalar_lea.vmem %s9, %s377
        %p379 = scmp.lt.s32.totalorder %s22, 1
        %s380 = scalar_select %p379, %s22, 1
        %s381 = smul.addr %s380, 2
        %s382 = smul.addr %s381, 8
        %s383 = scalar_lea.vmem %s0, %s382
        %p384 = scmp.lt.s32.totalorder %s22, 1
        %s385 = scalar_select %p384, %s22, 1
        %s386 = smul.addr %s385, 4
        %s387 = scalar_lea.vmem %s1, %s386
        %p388 = scmp.lt.s32.totalorder %s22, 1
        %s389 = scalar_select %p388, %s22, 1
        %s390 = smul.addr %s389, 8
        %s391 = scalar_lea.vmem %s9, %s390
        %v392 = vld [vmem:[%s383] sm:$0xff]
        %v393 = vld [vmem:[%s383 + $0x8] sm:$0xff]
        %v394 = vld [vmem:[#allocation2] sm:$0xff]
        %v395 = vld [vmem:[#allocation2 + $0x8] sm:$0xff]
        %v396 = vld [vmem:[#allocation2 + $0x10] sm:$0xff]
        %v397 = vld [vmem:[#allocation2 + $0x18] sm:$0xff]
        %v398 = vld [vmem:[#allocation2 + $0x20] sm:$0xff]
        %v399 = vld [vmem:[#allocation2 + $0x28] sm:$0xff]
        %v400 = vld [vmem:[#allocation2 + $0x30] sm:$0xff]
        %v401 = vld [vmem:[#allocation2 + $0x38] sm:$0xff]
        %v402 = vld [vmem:[%s387] sm:$0xf]
        %vm403 = vcmask 523264
        %v404 = vsel %vm403, %v392, 0.0
        %v405 = vsel %vm403, %v393, 0.0
        %v406 = vadd.f32 %v404, %v405
        %v407 = vrot.slane %v406, 4
        %v408 = vadd.f32 %v406, %v407
        %v409 = vrot.slane %v408, 2
        %v410 = vadd.f32 %v408, %v409
        %v411 = vrot.slane %v410, 1
        %v412 = vadd.f32 %v410, %v411
        %v413 = vmul.f32 %v392, %v392
        %v414 = vmul.f32 %v393, %v393
        %v415 = vsel %vm403, %v413, 0.0
        %v416 = vsel %vm403, %v414, 0.0
        %v417 = vadd.f32 %v415, %v416
        %v418 = vrot.slane %v417, 4
        %v419 = vadd.f32 %v417, %v418
        %v420 = vrot.slane %v419, 2
        %v421 = vadd.f32 %v419, %v420
        %v422 = vrot.slane %v421, 1
        %v423 = vadd.f32 %v421, %v422
        %v425 = vsel %vm403, %v412, 0
        %427 = vmatprep.subr.mxu0 0.0
        %428 = vmatpush1.msra.mxu0 %v394
        %429 = vmatprep.subr.mxu0 0.0
        %430 = vmatpush1.msra.mxu0 %v395
        %431 = vmatprep.subr.mxu0 0.0
        %432 = vmatpush1.msra.mxu0 %v396
        %433 = vmatprep.subr.mxu0 0.0
        %434 = vmatpush1.msra.mxu0 %v397
        %435 = vmatprep.subr.mxu0 0.0
        %436 = vmatpush1.msra.mxu0 %v398
        %437 = vmatprep.subr.mxu0 0.0
        %438 = vmatpush1.msra.mxu0 %v399
        %439 = vmatprep.subr.mxu0 0.0
        %440 = vmatpush1.msra.mxu0 %v400
        %441 = vmatprep.subr.mxu0 0.0
        %442 = vmatpush1.msra.mxu0 %v401
        %443 = vmatprep.subr.mxu0 0.0
        %444 = vmatpush1.msra.mxu0 0.0
        %445 = vmatprep.subr.mxu0 0.0
        %446 = vmatpush1.msra.mxu0 0.0
        %447 = vmatprep.subr.mxu0 0.0
        %448 = vmatpush1.msra.mxu0 0.0
        %449 = vmatprep.subr.mxu0 0.0
        %450 = vmatpush1.msra.mxu0 0.0
        %451 = vmatprep.subr.mxu0 0.0
        %452 = vmatpush1.msra.mxu0 0.0
        %453 = vmatprep.subr.mxu0 0.0
        %454 = vmatpush1.msra.mxu0 0.0
        %455 = vmatprep.subr.mxu0 0.0
        %456 = vmatpush1.msra.mxu0 0.0
        %457 = vmatprep.subr.mxu0 0.0
        %458 = vmatpush1.msra.mxu0 0.0
        %459 = vmatprep.subr.mxu0 0.0
        %460 = vmatpush1.msra.mxu0 0.0
        %461 = vmatprep.subr.mxu0 0.0
        %462 = vmatpush1.msra.mxu0 0.0
        %463 = vmatprep.subr.mxu0 0.0
        %464 = vmatpush1.msra.mxu0 0.0
        %465 = vmatprep.subr.mxu0 0.0
        %466 = vmatpush1.msra.mxu0 0.0
        %467 = vmatprep.subr.mxu0 0.0
        %468 = vmatpush1.msra.mxu0 0.0
        %469 = vmatprep.subr.mxu0 0.0
        %470 = vmatpush1.msra.mxu0 0.0
        %471 = vmatprep.subr.mxu0 0.0
        %472 = vmatpush1.msra.mxu0 0.0
        %473 = vmatprep.subr.mxu0 0.0
        %474 = vmatpush1.msra.mxu0 0.0
        %475 = vmatprep.subr.mxu0 0.0
        %476 = vmatpush1.msra.mxu0 0.0
        %477 = vmatprep.subr.mxu0 0.0
        %478 = vmatpush1.msra.mxu0 0.0
        %479 = vmatprep.subr.mxu0 0.0
        %480 = vmatpush1.msra.mxu0 0.0
        %481 = vmatprep.subr.mxu0 0.0
        %482 = vmatpush1.msra.mxu0 0.0
        %483 = vmatprep.subr.mxu0 0.0
        %484 = vmatpush1.msra.mxu0 0.0
        %485 = vmatprep.subr.mxu0 0.0
        %486 = vmatpush1.msra.mxu0 0.0
        %487 = vmatprep.subr.mxu0 0.0
        %488 = vmatpush1.msra.mxu0 0.0
        %489 = vmatprep.subr.mxu0 0.0
        %490 = vmatpush1.msra.mxu0 0.0
        %491 = vmatprep.mubr.f32.mxu0 0.0
        %492 = vmatmul.mubr.f32.gmra.mrb[0].mxu0 %v425
        %v493 = vpop.f32.mrb[0].mxu0
        %v494 = vadd.f32 0.0, %v493
        %v495 = vpop.f32.mrb[0].mxu0
        %496 = vdwg.mxu0
        %v498 = vsel %vm403, %v423, 0
        %500 = vmatprep.subr.mxu0 0.0
        %501 = vmatpush1.msra.mxu0 %v394
        %502 = vmatprep.subr.mxu0 0.0
        %503 = vmatpush1.msra.mxu0 %v395
        %504 = vmatprep.subr.mxu0 0.0
        %505 = vmatpush1.msra.mxu0 %v396
        %506 = vmatprep.subr.mxu0 0.0
        %507 = vmatpush1.msra.mxu0 %v397
        %508 = vmatprep.subr.mxu0 0.0
        %509 = vmatpush1.msra.mxu0 %v398
        %510 = vmatprep.subr.mxu0 0.0
        %511 = vmatpush1.msra.mxu0 %v399
        %512 = vmatprep.subr.mxu0 0.0
        %513 = vmatpush1.msra.mxu0 %v400
        %514 = vmatprep.subr.mxu0 0.0
        %515 = vmatpush1.msra.mxu0 %v401
        %516 = vmatprep.subr.mxu0 0.0
        %517 = vmatpush1.msra.mxu0 0.0
        %518 = vmatprep.subr.mxu0 0.0
        %519 = vmatpush1.msra.mxu0 0.0
        %520 = vmatprep.subr.mxu0 0.0
        %521 = vmatpush1.msra.mxu0 0.0
        %522 = vmatprep.subr.mxu0 0.0
        %523 = vmatpush1.msra.mxu0 0.0
        %524 = vmatprep.subr.mxu0 0.0
        %525 = vmatpush1.msra.mxu0 0.0
        %526 = vmatprep.subr.mxu0 0.0
        %527 = vmatpush1.msra.mxu0 0.0
        %528 = vmatprep.subr.mxu0 0.0
        %529 = vmatpush1.msra.mxu0 0.0
        %530 = vmatprep.subr.mxu0 0.0
        %531 = vmatpush1.msra.mxu0 0.0
        %532 = vmatprep.subr.mxu0 0.0
        %533 = vmatpush1.msra.mxu0 0.0
        %534 = vmatprep.subr.mxu0 0.0
        %535 = vmatpush1.msra.mxu0 0.0
        %536 = vmatprep.subr.mxu0 0.0
        %537 = vmatpush1.msra.mxu0 0.0
        %538 = vmatprep.subr.mxu0 0.0
        %539 = vmatpush1.msra.mxu0 0.0
        %540 = vmatprep.subr.mxu0 0.0
        %541 = vmatpush1.msra.mxu0 0.0
        %542 = vmatprep.subr.mxu0 0.0
        %543 = vmatpush1.msra.mxu0 0.0
        %544 = vmatprep.subr.mxu0 0.0
        %545 = vmatpush1.msra.mxu0 0.0
        %546 = vmatprep.subr.mxu0 0.0
        %547 = vmatpush1.msra.mxu0 0.0
        %548 = vmatprep.subr.mxu0 0.0
        %549 = vmatpush1.msra.mxu0 0.0
        %550 = vmatprep.subr.mxu0 0.0
        %551 = vmatpush1.msra.mxu0 0.0
        %552 = vmatprep.subr.mxu0 0.0
        %553 = vmatpush1.msra.mxu0 0.0
        %554 = vmatprep.subr.mxu0 0.0
        %555 = vmatpush1.msra.mxu0 0.0
        %556 = vmatprep.subr.mxu0 0.0
        %557 = vmatpush1.msra.mxu0 0.0
        %558 = vmatprep.subr.mxu0 0.0
        %559 = vmatpush1.msra.mxu0 0.0
        %560 = vmatprep.subr.mxu0 0.0
        %561 = vmatpush1.msra.mxu0 0.0
        %562 = vmatprep.subr.mxu0 0.0
        %563 = vmatpush1.msra.mxu0 0.0
        %564 = vmatprep.mubr.f32.mxu0 0.0
        %565 = vmatmul.mubr.f32.gmra.mrb[0].mxu0 %v498
        %v566 = vpop.f32.mrb[0].mxu0
        %v567 = vadd.f32 0.0, %v566
        %v568 = vpop.f32.mrb[0].mxu0
        %569 = vdwg.mxu0
        %v570 = vmul.f32 %v494, %v494
        %v571 = vsub.f32 %v567, %v570
        %v572 = vadd.f32 %v571, 1e-05
        %v573 = vrsqrt.pop %v572
        %v574 = vlaneseq
        %v575 = vshrl.u32 %v574, 7
        %v576 = vsub.s32 0, %v575
        %v577 = vrot.slane %v494, %v576
        %v578 = vsub.f32 %v392, %v577
        %v579 = vsub.f32 %v393, %v577
        %v580 = vmul.f32 %v402, %v573
        %v581 = vlaneseq
        %v582 = vshrl.u32 %v581, 7
        %v583 = vsub.s32 0, %v582
        %v584 = vrot.slane %v580, %v583
        %v585 = vmul.f32 %v578, %v584
        %v586 = vmul.f32 %v579, %v584
        %v587 = vlaneseq
        %v588 = vshrl.u32 %v587, 7
        %v589 = vsub.s32 1, %v588
        %v590 = vrot.slane %v402, %v589
        %v591 = vadd.f32 %v585, %v590
        %v592 = vadd.f32 %v586, %v590
        %v593 = vmax.f32 %v591, 0.0
        %v594 = vmax.f32 %v592, 0.0
        %v595 = vld [vmem:[%s5] sm:$0xff]
        %v596 = vld [vmem:[%s5 + $0x8] sm:$0xff]
        %vm597 = vcmask 130048
        %v599 = vsel %vm597, %v595, 0
        %v602 = vsel %vm597, %v596, 0
        %604 = vmatprep.subr.mxu0 0.0
        %605 = vmatpush1.msra.mxu0 %v593
        %606 = vmatprep.subr.mxu0 0.0
        %607 = vmatpush1.msra.mxu0 %v594
        %608 = vmatprep.subr.mxu0 0.0
        %609 = vmatpush1.msra.mxu0 0.0
        %610 = vmatprep.subr.mxu0 0.0
        %611 = vmatpush1.msra.mxu0 0.0
        %612 = vmatprep.subr.mxu0 0.0
        %613 = vmatpush1.msra.mxu0 0.0
        %614 = vmatprep.subr.mxu0 0.0
        %615 = vmatpush1.msra.mxu0 0.0
        %616 = vmatprep.subr.mxu0 0.0
        %617 = vmatpush1.msra.mxu0 0.0
        %618 = vmatprep.subr.mxu0 0.0
        %619 = vmatpush1.msra.mxu0 0.0
        %620 = vmatprep.subr.mxu0 0.0
        %621 = vmatpush1.msra.mxu0 0.0
        %622 = vmatprep.subr.mxu0 0.0
        %623 = vmatpush1.msra.mxu0 0.0
        %624 = vmatprep.subr.mxu0 0.0
        %625 = vmatpush1.msra.mxu0 0.0
        %626 = vmatprep.subr.mxu0 0.0
        %627 = vmatpush1.msra.mxu0 0.0
        %628 = vmatprep.subr.mxu0 0.0
        %629 = vmatpush1.msra.mxu0 0.0
        %630 = vmatprep.subr.mxu0 0.0
        %631 = vmatpush1.msra.mxu0 0.0
        %632 = vmatprep.subr.mxu0 0.0
        %633 = vmatpush1.msra.mxu0 0.0
        %634 = vmatprep.subr.mxu0 0.0
        %635 = vmatpush1.msra.mxu0 0.0
        %636 = vmatprep.subr.mxu0 0.0
        %637 = vmatpush1.msra.mxu0 0.0
        %638 = vmatprep.subr.mxu0 0.0
        %639 = vmatpush1.msra.mxu0 0.0
        %640 = vmatprep.subr.mxu0 0.0
        %641 = vmatpush1.msra.mxu0 0.0
        %642 = vmatprep.subr.mxu0 0.0
        %643 = vmatpush1.msra.mxu0 0.0
        %644 = vmatprep.subr.mxu0 0.0
        %645 = vmatpush1.msra.mxu0 0.0
        %646 = vmatprep.subr.mxu0 0.0
        %647 = vmatpush1.msra.mxu0 0.0
        %648 = vmatprep.subr.mxu0 0.0
        %649 = vmatpush1.msra.mxu0 0.0
        %650 = vmatprep.subr.mxu0 0.0
        %651 = vmatpush1.msra.mxu0 0.0
        %652 = vmatprep.subr.mxu0 0.0
        %653 = vmatpush1.msra.mxu0 0.0
        %654 = vmatprep.subr.mxu0 0.0
        %655 = vmatpush1.msra.mxu0 0.0
        %656 = vmatprep.subr.mxu0 0.0
        %657 = vmatpush1.msra.mxu0 0.0
        %658 = vmatprep.subr.mxu0 0.0
        %659 = vmatpush1.msra.mxu0 0.0
        %660 = vmatprep.subr.mxu0 0.0
        %661 = vmatpush1.msra.mxu0 0.0
        %662 = vmatprep.subr.mxu0 0.0
        %663 = vmatpush1.msra.mxu0 0.0
        %664 = vmatprep.subr.mxu0 0.0
        %665 = vmatpush1.msra.mxu0 0.0
        %666 = vmatprep.subr.mxu0 0.0
        %667 = vmatpush1.msra.mxu0 0.0
        %668 = vmatprep.mubr.f32.mxu0 0.0
        %669 = vmatmul.mubr.f32.gmra.mrb[0].mxu0 %v599
        %v670 = vpop.f32.mrb[0].mxu0
        %v671 = vadd.f32 0.0, %v670
        %v672 = vpop.f32.mrb[0].mxu0
        %673 = vmatprep.mubr.f32.mxu0 0.0
        %674 = vmatmul.mubr.f32.gmra.mrb[0].mxu0 %v602
        %v675 = vpop.f32.mrb[0].mxu0
        %v676 = vadd.f32 0.0, %v675
        %v677 = vpop.f32.mrb[0].mxu0
        %678 = vdwg.mxu0
        %s679 = scalar_lea.vmem %s5, 32
        %v680 = vld [vmem:[%s679] sm:$0xff]
        %v681 = vld [vmem:[%s679 + $0x8] sm:$0xff]
        %v683 = vsel %vm597, %v680, 0
        %v686 = vsel %vm597, %v681, 0
        %688 = vmatprep.subr.mxu0 0.0
        %689 = vmatpush1.msra.mxu0 %v593
        %690 = vmatprep.subr.mxu0 0.0
        %691 = vmatpush1.msra.mxu0 %v594
        %692 = vmatprep.subr.mxu0 0.0
        %693 = vmatpush1.msra.mxu0 0.0
        %694 = vmatprep.subr.mxu0 0.0
        %695 = vmatpush1.msra.mxu0 0.0
        %696 = vmatprep.subr.mxu0 0.0
        %697 = vmatpush1.msra.mxu0 0.0
        %698 = vmatprep.subr.mxu0 0.0
        %699 = vmatpush1.msra.mxu0 0.0
        %700 = vmatprep.subr.mxu0 0.0
        %701 = vmatpush1.msra.mxu0 0.0
        %702 = vmatprep.subr.mxu0 0.0
        %703 = vmatpush1.msra.mxu0 0.0
        %704 = vmatprep.subr.mxu0 0.0
        %705 = vmatpush1.msra.mxu0 0.0
        %706 = vmatprep.subr.mxu0 0.0
        %707 = vmatpush1.msra.mxu0 0.0
        %708 = vmatprep.subr.mxu0 0.0
        %709 = vmatpush1.msra.mxu0 0.0
        %710 = vmatprep.subr.mxu0 0.0
        %711 = vmatpush1.msra.mxu0 0.0
        %712 = vmatprep.subr.mxu0 0.0
        %713 = vmatpush1.msra.mxu0 0.0
        %714 = vmatprep.subr.mxu0 0.0
        %715 = vmatpush1.msra.mxu0 0.0
        %716 = vmatprep.subr.mxu0 0.0
        %717 = vmatpush1.msra.mxu0 0.0
        %718 = vmatprep.subr.mxu0 0.0
        %719 = vmatpush1.msra.mxu0 0.0
        %720 = vmatprep.subr.mxu0 0.0
        %721 = vmatpush1.msra.mxu0 0.0
        %722 = vmatprep.subr.mxu0 0.0
        %723 = vmatpush1.msra.mxu0 0.0
        %724 = vmatprep.subr.mxu0 0.0
        %725 = vmatpush1.msra.mxu0 0.0
        %726 = vmatprep.subr.mxu0 0.0
        %727 = vmatpush1.msra.mxu0 0.0
        %728 = vmatprep.subr.mxu0 0.0
        %729 = vmatpush1.msra.mxu0 0.0
        %730 = vmatprep.subr.mxu0 0.0
        %731 = vmatpush1.msra.mxu0 0.0
        %732 = vmatprep.subr.mxu0 0.0
        %733 = vmatpush1.msra.mxu0 0.0
        %734 = vmatprep.subr.mxu0 0.0
        %735 = vmatpush1.msra.mxu0 0.0
        %736 = vmatprep.subr.mxu0 0.0
        %737 = vmatpush1.msra.mxu0 0.0
        %738 = vmatprep.subr.mxu0 0.0
        %739 = vmatpush1.msra.mxu0 0.0
        %740 = vmatprep.subr.mxu0 0.0
        %741 = vmatpush1.msra.mxu0 0.0
        %742 = vmatprep.subr.mxu0 0.0
        %743 = vmatpush1.msra.mxu0 0.0
        %744 = vmatprep.subr.mxu0 0.0
        %745 = vmatpush1.msra.mxu0 0.0
        %746 = vmatprep.subr.mxu0 0.0
        %747 = vmatpush1.msra.mxu0 0.0
        %748 = vmatprep.subr.mxu0 0.0
        %749 = vmatpush1.msra.mxu0 0.0
        %750 = vmatprep.subr.mxu0 0.0
        %751 = vmatpush1.msra.mxu0 0.0
        %752 = vmatprep.mubr.f32.mxu0 0.0
        %753 = vmatmul.mubr.f32.gmra.mrb[0].mxu0 %v683
        %v754 = vpop.f32.mrb[0].mxu0
        %v755 = vadd.f32 0.0, %v754
        %v756 = vpop.f32.mrb[0].mxu0
        %757 = vmatprep.mubr.f32.mxu0 0.0
        %758 = vmatmul.mubr.f32.gmra.mrb[0].mxu0 %v686
        %v759 = vpop.f32.mrb[0].mxu0
        %v760 = vadd.f32 0.0, %v759
        %v761 = vpop.f32.mrb[0].mxu0
        %762 = vdwg.mxu0
        %v763 = vld [vmem:[%s2] sm:$0xff]
        %v764 = vld [vmem:[%s2 + $0x8] sm:$0xff]
        %v765 = vld [vmem:[%s2 + $0x10] sm:$0xff]
        %v766 = vld [vmem:[%s2 + $0x18] sm:$0xff]
        %v767 = vld [vmem:[%s2 + $0x20] sm:$0xff]
        %v768 = vld [vmem:[%s2 + $0x28] sm:$0xff]
        %v769 = vld [vmem:[%s2 + $0x30] sm:$0xff]
        %v770 = vld [vmem:[%s2 + $0x38] sm:$0xff]
        %s771 = scalar_lea.vmem %s2, 64
        %v772 = vld [vmem:[%s771] sm:$0xff]
        %v773 = vld [vmem:[%s771 + $0x8] sm:$0xff]
        %v774 = vld [vmem:[%s771 + $0x10] sm:$0xff]
        %v775 = vld [vmem:[%s771 + $0x18] sm:$0xff]
        %v776 = vld [vmem:[%s771 + $0x20] sm:$0xff]
        %v777 = vld [vmem:[%s771 + $0x28] sm:$0xff]
        %v778 = vld [vmem:[%s771 + $0x30] sm:$0xff]
        %v779 = vld [vmem:[%s771 + $0x38] sm:$0xff]
        %v781 = vsel %vm403, %v593, 0
        %v784 = vsel %vm403, %v594, 0
        %786 = vmatprep.subr.mxu0 0.0
        %787 = vmatpush1.msra.mxu0 %v772
        %788 = vmatprep.subr.mxu0 0.0
        %789 = vmatpush1.msra.mxu0 %v773
        %790 = vmatprep.subr.mxu0 0.0
        %791 = vmatpush1.msra.mxu0 %v774
        %792 = vmatprep.subr.mxu0 0.0
        %793 = vmatpush1.msra.mxu0 %v775
        %794 = vmatprep.subr.mxu0 0.0
        %795 = vmatpush1.msra.mxu0 %v776
        %796 = vmatprep.subr.mxu0 0.0
        %797 = vmatpush1.msra.mxu0 %v777
        %798 = vmatprep.subr.mxu0 0.0
        %799 = vmatpush1.msra.mxu0 %v778
        %800 = vmatprep.subr.mxu0 0.0
        %801 = vmatpush1.msra.mxu0 %v779
        %802 = vmatprep.subr.mxu0 0.0
        %803 = vmatpush1.msra.mxu0 0.0
        %804 = vmatprep.subr.mxu0 0.0
        %805 = vmatpush1.msra.mxu0 0.0
        %806 = vmatprep.subr.mxu0 0.0
        %807 = vmatpush1.msra.mxu0 0.0
        %808 = vmatprep.subr.mxu0 0.0
        %809 = vmatpush1.msra.mxu0 0.0
        %810 = vmatprep.subr.mxu0 0.0
        %811 = vmatpush1.msra.mxu0 0.0
        %812 = vmatprep.subr.mxu0 0.0
        %813 = vmatpush1.msra.mxu0 0.0
        %814 = vmatprep.subr.mxu0 0.0
        %815 = vmatpush1.msra.mxu0 0.0
        %816 = vmatprep.subr.mxu0 0.0
        %817 = vmatpush1.msra.mxu0 0.0
        %818 = vmatprep.subr.mxu0 0.0
        %819 = vmatpush1.msra.mxu0 0.0
        %820 = vmatprep.subr.mxu0 0.0
        %821 = vmatpush1.msra.mxu0 0.0
        %822 = vmatprep.subr.mxu0 0.0
        %823 = vmatpush1.msra.mxu0 0.0
        %824 = vmatprep.subr.mxu0 0.0
        %825 = vmatpush1.msra.mxu0 0.0
        %826 = vmatprep.subr.mxu0 0.0
        %827 = vmatpush1.msra.mxu0 0.0
        %828 = vmatprep.subr.mxu0 0.0
        %829 = vmatpush1.msra.mxu0 0.0
        %830 = vmatprep.subr.mxu0 0.0
        %831 = vmatpush1.msra.mxu0 0.0
        %832 = vmatprep.subr.mxu0 0.0
        %833 = vmatpush1.msra.mxu0 0.0
        %834 = vmatprep.subr.mxu0 0.0
        %835 = vmatpush1.msra.mxu0 0.0
        %836 = vmatprep.subr.mxu0 0.0
        %837 = vmatpush1.msra.mxu0 0.0
        %838 = vmatprep.subr.mxu0 0.0
        %839 = vmatpush1.msra.mxu0 0.0
        %840 = vmatprep.subr.mxu0 0.0
        %841 = vmatpush1.msra.mxu0 0.0
        %842 = vmatprep.subr.mxu0 0.0
        %843 = vmatpush1.msra.mxu0 0.0
        %844 = vmatprep.subr.mxu0 0.0
        %845 = vmatpush1.msra.mxu0 0.0
        %846 = vmatprep.subr.mxu0 0.0
        %847 = vmatpush1.msra.mxu0 0.0
        %848 = vmatprep.subr.mxu0 0.0
        %849 = vmatpush1.msra.mxu0 0.0
        %850 = vmatprep.mubr.f32.mxu0 0.0
        %851 = vmatmul.mubr.f32.gmra.mrb[0].mxu0 %v781
        %v852 = vpop.f32.mrb[0].mxu0
        %v853 = vadd.f32 0.0, %v852
        %v854 = vpop.f32.mrb[0].mxu0
        %855 = vmatprep.mubr.f32.mxu0 0.0
        %856 = vmatmul.mubr.f32.gmra.mrb[0].mxu0 %v784
        %v857 = vpop.f32.mrb[0].mxu0
        %v858 = vadd.f32 0.0, %v857
        %v859 = vpop.f32.mrb[0].mxu0
        %860 = vdwg.mxu0
        %v862 = vsel %vm403, %v671, 0
        %v865 = vsel %vm403, %v676, 0
        %867 = vmatprep.subr.mxu0 0.0
        %868 = vmatpush1.msra.mxu0 %v763
        %869 = vmatprep.subr.mxu0 0.0
        %870 = vmatpush1.msra.mxu0 %v764
        %871 = vmatprep.subr.mxu0 0.0
        %872 = vmatpush1.msra.mxu0 %v765
        %873 = vmatprep.subr.mxu0 0.0
        %874 = vmatpush1.msra.mxu0 %v766
        %875 = vmatprep.subr.mxu0 0.0
        %876 = vmatpush1.msra.mxu0 %v767
        %877 = vmatprep.subr.mxu0 0.0
        %878 = vmatpush1.msra.mxu0 %v768
        %879 = vmatprep.subr.mxu0 0.0
        %880 = vmatpush1.msra.mxu0 %v769
        %881 = vmatprep.subr.mxu0 0.0
        %882 = vmatpush1.msra.mxu0 %v770
        %883 = vmatprep.subr.mxu0 0.0
        %884 = vmatpush1.msra.mxu0 0.0
        %885 = vmatprep.subr.mxu0 0.0
        %886 = vmatpush1.msra.mxu0 0.0
        %887 = vmatprep.subr.mxu0 0.0
        %888 = vmatpush1.msra.mxu0 0.0
        %889 = vmatprep.subr.mxu0 0.0
        %890 = vmatpush1.msra.mxu0 0.0
        %891 = vmatprep.subr.mxu0 0.0
        %892 = vmatpush1.msra.mxu0 0.0
        %893 = vmatprep.subr.mxu0 0.0
        %894 = vmatpush1.msra.mxu0 0.0
        %895 = vmatprep.subr.mxu0 0.0
        %896 = vmatpush1.msra.mxu0 0.0
        %897 = vmatprep.subr.mxu0 0.0
        %898 = vmatpush1.msra.mxu0 0.0
        %899 = vmatprep.subr.mxu0 0.0
        %900 = vmatpush1.msra.mxu0 0.0
        %901 = vmatprep.subr.mxu0 0.0
        %902 = vmatpush1.msra.mxu0 0.0
        %903 = vmatprep.subr.mxu0 0.0
        %904 = vmatpush1.msra.mxu0 0.0
        %905 = vmatprep.subr.mxu0 0.0
        %906 = vmatpush1.msra.mxu0 0.0
        %907 = vmatprep.subr.mxu0 0.0
        %908 = vmatpush1.msra.mxu0 0.0
        %909 = vmatprep.subr.mxu0 0.0
        %910 = vmatpush1.msra.mxu0 0.0
        %911 = vmatprep.subr.mxu0 0.0
        %912 = vmatpush1.msra.mxu0 0.0
        %913 = vmatprep.subr.mxu0 0.0
        %914 = vmatpush1.msra.mxu0 0.0
        %915 = vmatprep.subr.mxu0 0.0
        %916 = vmatpush1.msra.mxu0 0.0
        %917 = vmatprep.subr.mxu0 0.0
        %918 = vmatpush1.msra.mxu0 0.0
        %919 = vmatprep.subr.mxu0 0.0
        %920 = vmatpush1.msra.mxu0 0.0
        %921 = vmatprep.subr.mxu0 0.0
        %922 = vmatpush1.msra.mxu0 0.0
        %923 = vmatprep.subr.mxu0 0.0
        %924 = vmatpush1.msra.mxu0 0.0
        %925 = vmatprep.subr.mxu0 0.0
        %926 = vmatpush1.msra.mxu0 0.0
        %927 = vmatprep.subr.mxu0 0.0
        %928 = vmatpush1.msra.mxu0 0.0
        %929 = vmatprep.subr.mxu0 0.0
        %930 = vmatpush1.msra.mxu0 0.0
        %931 = vmatprep.mubr.f32.mxu0 0.0
        %932 = vmatmul.mubr.f32.gmra.mrb[0].mxu0 %v862
        %v933 = vpop.f32.mrb[0].mxu0
        %v934 = vadd.f32 %v853, %v933
        %v935 = vpop.f32.mrb[0].mxu0
        %936 = vmatprep.mubr.f32.mxu0 0.0
        %937 = vmatmul.mubr.f32.gmra.mrb[0].mxu0 %v865
        %v938 = vpop.f32.mrb[0].mxu0
        %v939 = vadd.f32 %v858, %v938
        %v940 = vpop.f32.mrb[0].mxu0
        %941 = vdwg.mxu0
        %s942 = scalar_lea.vmem %s2, 128
        %v943 = vld [vmem:[%s942] sm:$0xff]
        %v944 = vld [vmem:[%s942 + $0x8] sm:$0xff]
        %v945 = vld [vmem:[%s942 + $0x10] sm:$0xff]
        %v946 = vld [vmem:[%s942 + $0x18] sm:$0xff]
        %v947 = vld [vmem:[%s942 + $0x20] sm:$0xff]
        %v948 = vld [vmem:[%s942 + $0x28] sm:$0xff]
        %v949 = vld [vmem:[%s942 + $0x30] sm:$0xff]
        %v950 = vld [vmem:[%s942 + $0x38] sm:$0xff]
        %v952 = vsel %vm403, %v755, 0
        %v955 = vsel %vm403, %v760, 0
        %957 = vmatprep.subr.mxu0 0.0
        %958 = vmatpush1.msra.mxu0 %v943
        %959 = vmatprep.subr.mxu0 0.0
        %960 = vmatpush1.msra.mxu0 %v944
        %961 = vmatprep.subr.mxu0 0.0
        %962 = vmatpush1.msra.mxu0 %v945
        %963 = vmatprep.subr.mxu0 0.0
        %964 = vmatpush1.msra.mxu0 %v946
        %965 = vmatprep.subr.mxu0 0.0
        %966 = vmatpush1.msra.mxu0 %v947
        %967 = vmatprep.subr.mxu0 0.0
        %968 = vmatpush1.msra.mxu0 %v948
        %969 = vmatprep.subr.mxu0 0.0
        %970 = vmatpush1.msra.mxu0 %v949
        %971 = vmatprep.subr.mxu0 0.0
        %972 = vmatpush1.msra.mxu0 %v950
        %973 = vmatprep.subr.mxu0 0.0
        %974 = vmatpush1.msra.mxu0 0.0
        %975 = vmatprep.subr.mxu0 0.0
        %976 = vmatpush1.msra.mxu0 0.0
        %977 = vmatprep.subr.mxu0 0.0
        %978 = vmatpush1.msra.mxu0 0.0
        %979 = vmatprep.subr.mxu0 0.0
        %980 = vmatpush1.msra.mxu0 0.0
        %981 = vmatprep.subr.mxu0 0.0
        %982 = vmatpush1.msra.mxu0 0.0
        %983 = vmatprep.subr.mxu0 0.0
        %984 = vmatpush1.msra.mxu0 0.0
        %985 = vmatprep.subr.mxu0 0.0
        %986 = vmatpush1.msra.mxu0 0.0
        %987 = vmatprep.subr.mxu0 0.0
        %988 = vmatpush1.msra.mxu0 0.0
        %989 = vmatprep.subr.mxu0 0.0
        %990 = vmatpush1.msra.mxu0 0.0
        %991 = vmatprep.subr.mxu0 0.0
        %992 = vmatpush1.msra.mxu0 0.0
        %993 = vmatprep.subr.mxu0 0.0
        %994 = vmatpush1.msra.mxu0 0.0
        %995 = vmatprep.subr.mxu0 0.0
        %996 = vmatpush1.msra.mxu0 0.0
        %997 = vmatprep.subr.mxu0 0.0
        %998 = vmatpush1.msra.mxu0 0.0
        %999 = vmatprep.subr.mxu0 0.0
        %1000 = vmatpush1.msra.mxu0 0.0
        %1001 = vmatprep.subr.mxu0 0.0
        %1002 = vmatpush1.msra.mxu0 0.0
        %1003 = vmatprep.subr.mxu0 0.0
        %1004 = vmatpush1.msra.mxu0 0.0
        %1005 = vmatprep.subr.mxu0 0.0
        %1006 = vmatpush1.msra.mxu0 0.0
        %1007 = vmatprep.subr.mxu0 0.0
        %1008 = vmatpush1.msra.mxu0 0.0
        %1009 = vmatprep.subr.mxu0 0.0
        %1010 = vmatpush1.msra.mxu0 0.0
        %1011 = vmatprep.subr.mxu0 0.0
        %1012 = vmatpush1.msra.mxu0 0.0
        %1013 = vmatprep.subr.mxu0 0.0
        %1014 = vmatpush1.msra.mxu0 0.0
        %1015 = vmatprep.subr.mxu0 0.0
        %1016 = vmatpush1.msra.mxu0 0.0
        %1017 = vmatprep.subr.mxu0 0.0
        %1018 = vmatpush1.msra.mxu0 0.0
        %1019 = vmatprep.subr.mxu0 0.0
        %1020 = vmatpush1.msra.mxu0 0.0
        %1021 = vmatprep.mubr.f32.mxu0 0.0
        %1022 = vmatmul.mubr.f32.gmra.mrb[0].mxu0 %v952
        %v1023 = vpop.f32.mrb[0].mxu0
        %v1024 = vadd.f32 0.0, %v1023
        %v1025 = vpop.f32.mrb[0].mxu0
        %1026 = vmatprep.mubr.f32.mxu0 0.0
        %1027 = vmatmul.mubr.f32.gmra.mrb[0].mxu0 %v955
        %v1028 = vpop.f32.mrb[0].mxu0
        %v1029 = vadd.f32 0.0, %v1028
        %v1030 = vpop.f32.mrb[0].mxu0
        %1031 = vdwg.mxu0
        %v1032 = vadd.f32 %v934, %v1024
        %v1033 = vadd.f32 %v939, %v1029
        %v1034 = vsel %vm403, %v1032, 0.0
        %v1035 = vsel %vm403, %v1033, 0.0
        %v1036 = vadd.f32 %v1034, %v1035
        %v1037 = vrot.slane %v1036, 4
        %v1038 = vadd.f32 %v1036, %v1037
        %v1039 = vrot.slane %v1038, 2
        %v1040 = vadd.f32 %v1038, %v1039
        %v1041 = vrot.slane %v1040, 1
        %v1042 = vadd.f32 %v1040, %v1041
        %v1043 = vmul.f32 %v1032, %v1032
        %v1044 = vmul.f32 %v1033, %v1033
        %v1045 = vsel %vm403, %v1043, 0.0
        %v1046 = vsel %vm403, %v1044, 0.0
        %v1047 = vadd.f32 %v1045, %v1046
        %v1048 = vrot.slane %v1047, 4
        %v1049 = vadd.f32 %v1047, %v1048
        %v1050 = vrot.slane %v1049, 2
        %v1051 = vadd.f32 %v1049, %v1050
        %v1052 = vrot.slane %v1051, 1
        %v1053 = vadd.f32 %v1051, %v1052
        %v1055 = vsel %vm403, %v1042, 0
        %1057 = vmatprep.subr.mxu0 0.0
        %1058 = vmatpush1.msra.mxu0 %v394
        %1059 = vmatprep.subr.mxu0 0.0
        %1060 = vmatpush1.msra.mxu0 %v395
        %1061 = vmatprep.subr.mxu0 0.0
        %1062 = vmatpush1.msra.mxu0 %v396
        %1063 = vmatprep.subr.mxu0 0.0
        %1064 = vmatpush1.msra.mxu0 %v397
        %1065 = vmatprep.subr.mxu0 0.0
        %1066 = vmatpush1.msra.mxu0 %v398
        %1067 = vmatprep.subr.mxu0 0.0
        %1068 = vmatpush1.msra.mxu0 %v399
        %1069 = vmatprep.subr.mxu0 0.0
        %1070 = vmatpush1.msra.mxu0 %v400
        %1071 = vmatprep.subr.mxu0 0.0
        %1072 = vmatpush1.msra.mxu0 %v401
        %1073 = vmatprep.subr.mxu0 0.0
        %1074 = vmatpush1.msra.mxu0 0.0
        %1075 = vmatprep.subr.mxu0 0.0
        %1076 = vmatpush1.msra.mxu0 0.0
        %1077 = vmatprep.subr.mxu0 0.0
        %1078 = vmatpush1.msra.mxu0 0.0
        %1079 = vmatprep.subr.mxu0 0.0
        %1080 = vmatpush1.msra.mxu0 0.0
        %1081 = vmatprep.subr.mxu0 0.0
        %1082 = vmatpush1.msra.mxu0 0.0
        %1083 = vmatprep.subr.mxu0 0.0
        %1084 = vmatpush1.msra.mxu0 0.0
        %1085 = vmatprep.subr.mxu0 0.0
        %1086 = vmatpush1.msra.mxu0 0.0
        %1087 = vmatprep.subr.mxu0 0.0
        %1088 = vmatpush1.msra.mxu0 0.0
        %1089 = vmatprep.subr.mxu0 0.0
        %1090 = vmatpush1.msra.mxu0 0.0
        %1091 = vmatprep.subr.mxu0 0.0
        %1092 = vmatpush1.msra.mxu0 0.0
        %1093 = vmatprep.subr.mxu0 0.0
        %1094 = vmatpush1.msra.mxu0 0.0
        %1095 = vmatprep.subr.mxu0 0.0
        %1096 = vmatpush1.msra.mxu0 0.0
        %1097 = vmatprep.subr.mxu0 0.0
        %1098 = vmatpush1.msra.mxu0 0.0
        %1099 = vmatprep.subr.mxu0 0.0
        %1100 = vmatpush1.msra.mxu0 0.0
        %1101 = vmatprep.subr.mxu0 0.0
        %1102 = vmatpush1.msra.mxu0 0.0
        %1103 = vmatprep.subr.mxu0 0.0
        %1104 = vmatpush1.msra.mxu0 0.0
        %1105 = vmatprep.subr.mxu0 0.0
        %1106 = vmatpush1.msra.mxu0 0.0
        %1107 = vmatprep.subr.mxu0 0.0
        %1108 = vmatpush1.msra.mxu0 0.0
        %1109 = vmatprep.subr.mxu0 0.0
        %1110 = vmatpush1.msra.mxu0 0.0
        %1111 = vmatprep.subr.mxu0 0.0
        %1112 = vmatpush1.msra.mxu0 0.0
        %1113 = vmatprep.subr.mxu0 0.0
        %1114 = vmatpush1.msra.mxu0 0.0
        %1115 = vmatprep.subr.mxu0 0.0
        %1116 = vmatpush1.msra.mxu0 0.0
        %1117 = vmatprep.subr.mxu0 0.0
        %1118 = vmatpush1.msra.mxu0 0.0
        %1119 = vmatprep.subr.mxu0 0.0
        %1120 = vmatpush1.msra.mxu0 0.0
        %1121 = vmatprep.mubr.f32.mxu0 0.0
        %1122 = vmatmul.mubr.f32.gmra.mrb[0].mxu0 %v1055
        %v1123 = vpop.f32.mrb[0].mxu0
        %v1124 = vadd.f32 0.0, %v1123
        %v1125 = vpop.f32.mrb[0].mxu0
        %1126 = vdwg.mxu0
        %v1128 = vsel %vm403, %v1053, 0
        %1130 = vmatprep.subr.mxu0 0.0
        %1131 = vmatpush1.msra.mxu0 %v394
        %1132 = vmatprep.subr.mxu0 0.0
        %1133 = vmatpush1.msra.mxu0 %v395
        %1134 = vmatprep.subr.mxu0 0.0
        %1135 = vmatpush1.msra.mxu0 %v396
        %1136 = vmatprep.subr.mxu0 0.0
        %1137 = vmatpush1.msra.mxu0 %v397
        %1138 = vmatprep.subr.mxu0 0.0
        %1139 = vmatpush1.msra.mxu0 %v398
        %1140 = vmatprep.subr.mxu0 0.0
        %1141 = vmatpush1.msra.mxu0 %v399
        %1142 = vmatprep.subr.mxu0 0.0
        %1143 = vmatpush1.msra.mxu0 %v400
        %1144 = vmatprep.subr.mxu0 0.0
        %1145 = vmatpush1.msra.mxu0 %v401
        %1146 = vmatprep.subr.mxu0 0.0
        %1147 = vmatpush1.msra.mxu0 0.0
        %1148 = vmatprep.subr.mxu0 0.0
        %1149 = vmatpush1.msra.mxu0 0.0
        %1150 = vmatprep.subr.mxu0 0.0
        %1151 = vmatpush1.msra.mxu0 0.0
        %1152 = vmatprep.subr.mxu0 0.0
        %1153 = vmatpush1.msra.mxu0 0.0
        %1154 = vmatprep.subr.mxu0 0.0
        %1155 = vmatpush1.msra.mxu0 0.0
        %1156 = vmatprep.subr.mxu0 0.0
        %1157 = vmatpush1.msra.mxu0 0.0
        %1158 = vmatprep.subr.mxu0 0.0
        %1159 = vmatpush1.msra.mxu0 0.0
        %1160 = vmatprep.subr.mxu0 0.0
        %1161 = vmatpush1.msra.mxu0 0.0
        %1162 = vmatprep.subr.mxu0 0.0
        %1163 = vmatpush1.msra.mxu0 0.0
        %1164 = vmatprep.subr.mxu0 0.0
        %1165 = vmatpush1.msra.mxu0 0.0
        %1166 = vmatprep.subr.mxu0 0.0
        %1167 = vmatpush1.msra.mxu0 0.0
        %1168 = vmatprep.subr.mxu0 0.0
        %1169 = vmatpush1.msra.mxu0 0.0
        %1170 = vmatprep.subr.mxu0 0.0
        %1171 = vmatpush1.msra.mxu0 0.0
        %1172 = vmatprep.subr.mxu0 0.0
        %1173 = vmatpush1.msra.mxu0 0.0
        %1174 = vmatprep.subr.mxu0 0.0
        %1175 = vmatpush1.msra.mxu0 0.0
        %1176 = vmatprep.subr.mxu0 0.0
        %1177 = vmatpush1.msra.mxu0 0.0
        %1178 = vmatprep.subr.mxu0 0.0
        %1179 = vmatpush1.msra.mxu0 0.0
        %1180 = vmatprep.subr.mxu0 0.0
        %1181 = vmatpush1.msra.mxu0 0.0
        %1182 = vmatprep.subr.mxu0 0.0
        %1183 = vmatpush1.msra.mxu0 0.0
        %1184 = vmatprep.subr.mxu0 0.0
        %1185 = vmatpush1.msra.mxu0 0.0
        %1186 = vmatprep.subr.mxu0 0.0
        %1187 = vmatpush1.msra.mxu0 0.0
        %1188 = vmatprep.subr.mxu0 0.0
        %1189 = vmatpush1.msra.mxu0 0.0
        %1190 = vmatprep.subr.mxu0 0.0
        %1191 = vmatpush1.msra.mxu0 0.0
        %1192 = vmatprep.subr.mxu0 0.0
        %1193 = vmatpush1.msra.mxu0 0.0
        %1194 = vmatprep.mubr.f32.mxu0 0.0
        %1195 = vmatmul.mubr.f32.gmra.mrb[0].mxu0 %v1128
        %v1196 = vpop.f32.mrb[0].mxu0
        %v1197 = vadd.f32 0.0, %v1196
        %v1198 = vpop.f32.mrb[0].mxu0
        %1199 = vdwg.mxu0
        %v1200 = vmul.f32 %v1124, %v1124
        %v1201 = vsub.f32 %v1197, %v1200
        %v1202 = vadd.f32 %v1201, 1e-05
        %v1203 = vrsqrt.pop %v1202
        %v1204 = vlaneseq
        %v1205 = vshrl.u32 %v1204, 7
        %v1206 = vsub.s32 0, %v1205
        %v1207 = vrot.slane %v1124, %v1206
        %v1208 = vsub.f32 %v1032, %v1207
        %v1209 = vsub.f32 %v1033, %v1207
        %v1211 = vrot.slane %v1203, 6
        %v1213 = vmul.f32 %v402, %v1211
        %v1214 = vlaneseq
        %v1215 = vshrl.u32 %v1214, 7
        %v1216 = vsub.s32 2, %v1215
        %v1217 = vrot.slane %v1213, %v1216
        %v1218 = vmul.f32 %v1208, %v1217
        %v1219 = vmul.f32 %v1209, %v1217
        %v1220 = vlaneseq
        %v1221 = vshrl.u32 %v1220, 7
        %v1222 = vsub.s32 3, %v1221
        %v1223 = vrot.slane %v402, %v1222
        %v1224 = vadd.f32 %v1218, %v1223
        %v1225 = vadd.f32 %v1219, %v1223
        %v1226 = vmax.f32 %v1224, 0.0
        %v1227 = vmax.f32 %v1225, 0.0
        %v1228 = vld [vmem:[#allocation4] sm:$0xff]
        %v1230 = vsel %vm597, %v1228, 0
        %1232 = vmatprep.subr.mxu0 0.0
        %1233 = vmatpush1.msra.mxu0 %v1226
        %1234 = vmatprep.subr.mxu0 0.0
        %1235 = vmatpush1.msra.mxu0 %v1227
        %1236 = vmatprep.subr.mxu0 0.0
        %1237 = vmatpush1.msra.mxu0 0.0
        %1238 = vmatprep.subr.mxu0 0.0
        %1239 = vmatpush1.msra.mxu0 0.0
        %1240 = vmatprep.subr.mxu0 0.0
        %1241 = vmatpush1.msra.mxu0 0.0
        %1242 = vmatprep.subr.mxu0 0.0
        %1243 = vmatpush1.msra.mxu0 0.0
        %1244 = vmatprep.subr.mxu0 0.0
        %1245 = vmatpush1.msra.mxu0 0.0
        %1246 = vmatprep.subr.mxu0 0.0
        %1247 = vmatpush1.msra.mxu0 0.0
        %1248 = vmatprep.subr.mxu0 0.0
        %1249 = vmatpush1.msra.mxu0 0.0
        %1250 = vmatprep.subr.mxu0 0.0
        %1251 = vmatpush1.msra.mxu0 0.0
        %1252 = vmatprep.subr.mxu0 0.0
        %1253 = vmatpush1.msra.mxu0 0.0
        %1254 = vmatprep.subr.mxu0 0.0
        %1255 = vmatpush1.msra.mxu0 0.0
        %1256 = vmatprep.subr.mxu0 0.0
        %1257 = vmatpush1.msra.mxu0 0.0
        %1258 = vmatprep.subr.mxu0 0.0
        %1259 = vmatpush1.msra.mxu0 0.0
        %1260 = vmatprep.subr.mxu0 0.0
        %1261 = vmatpush1.msra.mxu0 0.0
        %1262 = vmatprep.subr.mxu0 0.0
        %1263 = vmatpush1.msra.mxu0 0.0
        %1264 = vmatprep.subr.mxu0 0.0
        %1265 = vmatpush1.msra.mxu0 0.0
        %1266 = vmatprep.subr.mxu0 0.0
        %1267 = vmatpush1.msra.mxu0 0.0
        %1268 = vmatprep.subr.mxu0 0.0
        %1269 = vmatpush1.msra.mxu0 0.0
        %1270 = vmatprep.subr.mxu0 0.0
        %1271 = vmatpush1.msra.mxu0 0.0
        %1272 = vmatprep.subr.mxu0 0.0
        %1273 = vmatpush1.msra.mxu0 0.0
        %1274 = vmatprep.subr.mxu0 0.0
        %1275 = vmatpush1.msra.mxu0 0.0
        %1276 = vmatprep.subr.mxu0 0.0
        %1277 = vmatpush1.msra.mxu0 0.0
        %1278 = vmatprep.subr.mxu0 0.0
        %1279 = vmatpush1.msra.mxu0 0.0
        %1280 = vmatprep.subr.mxu0 0.0
        %1281 = vmatpush1.msra.mxu0 0.0
        %1282 = vmatprep.subr.mxu0 0.0
        %1283 = vmatpush1.msra.mxu0 0.0
        %1284 = vmatprep.subr.mxu0 0.0
        %1285 = vmatpush1.msra.mxu0 0.0
        %1286 = vmatprep.subr.mxu0 0.0
        %1287 = vmatpush1.msra.mxu0 0.0
        %1288 = vmatprep.subr.mxu0 0.0
        %1289 = vmatpush1.msra.mxu0 0.0
        %1290 = vmatprep.subr.mxu0 0.0
        %1291 = vmatpush1.msra.mxu0 0.0
        %1292 = vmatprep.subr.mxu0 0.0
        %1293 = vmatpush1.msra.mxu0 0.0
        %1294 = vmatprep.subr.mxu0 0.0
        %1295 = vmatpush1.msra.mxu0 0.0
        %1296 = vmatprep.mubr.f32.mxu0 0.0
        %1297 = vmatmul.mubr.f32.gmra.mrb[0].mxu0 %v1230
        %v1298 = vpop.f32.mrb[0].mxu0
        %v1299 = vadd.f32 0.0, %v1298
        %v1300 = vpop.f32.mrb[0].mxu0
        %1301 = vdwg.mxu0
        %v1302 = vld [vmem:[%s3] sm:$0xff]
        %v1303 = vld [vmem:[%s3 + $0x8] sm:$0xff]
        %v1304 = vld [vmem:[%s3 + $0x10] sm:$0xff]
        %v1305 = vld [vmem:[%s3 + $0x18] sm:$0xff]
        %v1306 = vld [vmem:[%s3 + $0x20] sm:$0xff]
        %v1307 = vld [vmem:[%s3 + $0x28] sm:$0xff]
        %v1308 = vld [vmem:[%s3 + $0x30] sm:$0xff]
        %v1309 = vld [vmem:[%s3 + $0x38] sm:$0xff]
        %s1310 = scalar_lea.vmem [#allocation4], 8
        %v1311 = vld [vmem:[%s1310] sm:$0xff]
        %v1313 = vsel %vm597, %v1311, 0
        %1315 = vmatprep.subr.mxu0 0.0
        %1316 = vmatpush1.msra.mxu0 %v1226
        %1317 = vmatprep.subr.mxu0 0.0
        %1318 = vmatpush1.msra.mxu0 %v1227
        %1319 = vmatprep.subr.mxu0 0.0
        %1320 = vmatpush1.msra.mxu0 0.0
        %1321 = vmatprep.subr.mxu0 0.0
        %1322 = vmatpush1.msra.mxu0 0.0
        %1323 = vmatprep.subr.mxu0 0.0
        %1324 = vmatpush1.msra.mxu0 0.0
        %1325 = vmatprep.subr.mxu0 0.0
        %1326 = vmatpush1.msra.mxu0 0.0
        %1327 = vmatprep.subr.mxu0 0.0
        %1328 = vmatpush1.msra.mxu0 0.0
        %1329 = vmatprep.subr.mxu0 0.0
        %1330 = vmatpush1.msra.mxu0 0.0
        %1331 = vmatprep.subr.mxu0 0.0
        %1332 = vmatpush1.msra.mxu0 0.0
        %1333 = vmatprep.subr.mxu0 0.0
        %1334 = vmatpush1.msra.mxu0 0.0
        %1335 = vmatprep.subr.mxu0 0.0
        %1336 = vmatpush1.msra.mxu0 0.0
        %1337 = vmatprep.subr.mxu0 0.0
        %1338 = vmatpush1.msra.mxu0 0.0
        %1339 = vmatprep.subr.mxu0 0.0
        %1340 = vmatpush1.msra.mxu0 0.0
        %1341 = vmatprep.subr.mxu0 0.0
        %1342 = vmatpush1.msra.mxu0 0.0
        %1343 = vmatprep.subr.mxu0 0.0
        %1344 = vmatpush1.msra.mxu0 0.0
        %1345 = vmatprep.subr.mxu0 0.0
        %1346 = vmatpush1.msra.mxu0 0.0
        %1347 = vmatprep.subr.mxu0 0.0
        %1348 = vmatpush1.msra.mxu0 0.0
        %1349 = vmatprep.subr.mxu0 0.0
        %1350 = vmatpush1.msra.mxu0 0.0
        %1351 = vmatprep.subr.mxu0 0.0
        %1352 = vmatpush1.msra.mxu0 0.0
        %1353 = vmatprep.subr.mxu0 0.0
        %1354 = vmatpush1.msra.mxu0 0.0
        %1355 = vmatprep.subr.mxu0 0.0
        %1356 = vmatpush1.msra.mxu0 0.0
        %1357 = vmatprep.subr.mxu0 0.0
        %1358 = vmatpush1.msra.mxu0 0.0
        %1359 = vmatprep.subr.mxu0 0.0
        %1360 = vmatpush1.msra.mxu0 0.0
        %1361 = vmatprep.subr.mxu0 0.0
        %1362 = vmatpush1.msra.mxu0 0.0
        %1363 = vmatprep.subr.mxu0 0.0
        %1364 = vmatpush1.msra.mxu0 0.0
        %1365 = vmatprep.subr.mxu0 0.0
        %1366 = vmatpush1.msra.mxu0 0.0
        %1367 = vmatprep.subr.mxu0 0.0
        %1368 = vmatpush1.msra.mxu0 0.0
        %1369 = vmatprep.subr.mxu0 0.0
        %1370 = vmatpush1.msra.mxu0 0.0
        %1371 = vmatprep.subr.mxu0 0.0
        %1372 = vmatpush1.msra.mxu0 0.0
        %1373 = vmatprep.subr.mxu0 0.0
        %1374 = vmatpush1.msra.mxu0 0.0
        %1375 = vmatprep.subr.mxu0 0.0
        %1376 = vmatpush1.msra.mxu0 0.0
        %1377 = vmatprep.subr.mxu0 0.0
        %1378 = vmatpush1.msra.mxu0 0.0
        %1379 = vmatprep.mubr.f32.mxu0 0.0
        %1380 = vmatmul.mubr.f32.gmra.mrb[0].mxu0 %v1313
        %v1381 = vpop.f32.mrb[0].mxu0
        %v1382 = vadd.f32 0.0, %v1381
        %v1383 = vpop.f32.mrb[0].mxu0
        %1384 = vdwg.mxu0
        %s1385 = scalar_lea.vmem %s3, 64
        %v1386 = vld [vmem:[%s1385] sm:$0xff]
        %v1387 = vld [vmem:[%s1385 + $0x8] sm:$0xff]
        %v1388 = vld [vmem:[%s1385 + $0x10] sm:$0xff]
        %v1389 = vld [vmem:[%s1385 + $0x18] sm:$0xff]
        %v1390 = vld [vmem:[%s1385 + $0x20] sm:$0xff]
        %v1391 = vld [vmem:[%s1385 + $0x28] sm:$0xff]
        %v1392 = vld [vmem:[%s1385 + $0x30] sm:$0xff]
        %v1393 = vld [vmem:[%s1385 + $0x38] sm:$0xff]
        %v1395 = vsel %vm403, %v1382, 0
        %1397 = vmatprep.subr.mxu0 0.0
        %1398 = vmatpush1.msra.mxu0 %v1386
        %1399 = vmatprep.subr.mxu0 0.0
        %1400 = vmatpush1.msra.mxu0 %v1387
        %1401 = vmatprep.subr.mxu0 0.0
        %1402 = vmatpush1.msra.mxu0 %v1388
        %1403 = vmatprep.subr.mxu0 0.0
        %1404 = vmatpush1.msra.mxu0 %v1389
        %1405 = vmatprep.subr.mxu0 0.0
        %1406 = vmatpush1.msra.mxu0 %v1390
        %1407 = vmatprep.subr.mxu0 0.0
        %1408 = vmatpush1.msra.mxu0 %v1391
        %1409 = vmatprep.subr.mxu0 0.0
        %1410 = vmatpush1.msra.mxu0 %v1392
        %1411 = vmatprep.subr.mxu0 0.0
        %1412 = vmatpush1.msra.mxu0 %v1393
        %1413 = vmatprep.subr.mxu0 0.0
        %1414 = vmatpush1.msra.mxu0 0.0
        %1415 = vmatprep.subr.mxu0 0.0
        %1416 = vmatpush1.msra.mxu0 0.0
        %1417 = vmatprep.subr.mxu0 0.0
        %1418 = vmatpush1.msra.mxu0 0.0
        %1419 = vmatprep.subr.mxu0 0.0
        %1420 = vmatpush1.msra.mxu0 0.0
        %1421 = vmatprep.subr.mxu0 0.0
        %1422 = vmatpush1.msra.mxu0 0.0
        %1423 = vmatprep.subr.mxu0 0.0
        %1424 = vmatpush1.msra.mxu0 0.0
        %1425 = vmatprep.subr.mxu0 0.0
        %1426 = vmatpush1.msra.mxu0 0.0
        %1427 = vmatprep.subr.mxu0 0.0
        %1428 = vmatpush1.msra.mxu0 0.0
        %1429 = vmatprep.subr.mxu0 0.0
        %1430 = vmatpush1.msra.mxu0 0.0
        %1431 = vmatprep.subr.mxu0 0.0
        %1432 = vmatpush1.msra.mxu0 0.0
        %1433 = vmatprep.subr.mxu0 0.0
        %1434 = vmatpush1.msra.mxu0 0.0
        %1435 = vmatprep.subr.mxu0 0.0
        %1436 = vmatpush1.msra.mxu0 0.0
        %1437 = vmatprep.subr.mxu0 0.0
        %1438 = vmatpush1.msra.mxu0 0.0
        %1439 = vmatprep.subr.mxu0 0.0
        %1440 = vmatpush1.msra.mxu0 0.0
        %1441 = vmatprep.subr.mxu0 0.0
        %1442 = vmatpush1.msra.mxu0 0.0
        %1443 = vmatprep.subr.mxu0 0.0
        %1444 = vmatpush1.msra.mxu0 0.0
        %1445 = vmatprep.subr.mxu0 0.0
        %1446 = vmatpush1.msra.mxu0 0.0
        %1447 = vmatprep.subr.mxu0 0.0
        %1448 = vmatpush1.msra.mxu0 0.0
        %1449 = vmatprep.subr.mxu0 0.0
        %1450 = vmatpush1.msra.mxu0 0.0
        %1451 = vmatprep.subr.mxu0 0.0
        %1452 = vmatpush1.msra.mxu0 0.0
        %1453 = vmatprep.subr.mxu0 0.0
        %1454 = vmatpush1.msra.mxu0 0.0
        %1455 = vmatprep.subr.mxu0 0.0
        %1456 = vmatpush1.msra.mxu0 0.0
        %1457 = vmatprep.subr.mxu0 0.0
        %1458 = vmatpush1.msra.mxu0 0.0
        %1459 = vmatprep.subr.mxu0 0.0
        %1460 = vmatpush1.msra.mxu0 0.0
        %1461 = vmatprep.mubr.f32.mxu0 0.0
        %1462 = vmatmul.mubr.f32.gmra.mrb[0].mxu0 %v1395
        %v1463 = vpop.f32.mrb[0].mxu0
        %v1464 = vadd.f32 0.0, %v1463
        %v1465 = vpop.f32.mrb[0].mxu0
        %1466 = vdwg.mxu0
        %v1468 = vsel %vm403, %v1299, 0
        %1470 = vmatprep.subr.mxu0 0.0
        %1471 = vmatpush1.msra.mxu0 %v1302
        %1472 = vmatprep.subr.mxu0 0.0
        %1473 = vmatpush1.msra.mxu0 %v1303
        %1474 = vmatprep.subr.mxu0 0.0
        %1475 = vmatpush1.msra.mxu0 %v1304
        %1476 = vmatprep.subr.mxu0 0.0
        %1477 = vmatpush1.msra.mxu0 %v1305
        %1478 = vmatprep.subr.mxu0 0.0
        %1479 = vmatpush1.msra.mxu0 %v1306
        %1480 = vmatprep.subr.mxu0 0.0
        %1481 = vmatpush1.msra.mxu0 %v1307
        %1482 = vmatprep.subr.mxu0 0.0
        %1483 = vmatpush1.msra.mxu0 %v1308
        %1484 = vmatprep.subr.mxu0 0.0
        %1485 = vmatpush1.msra.mxu0 %v1309
        %1486 = vmatprep.subr.mxu0 0.0
        %1487 = vmatpush1.msra.mxu0 0.0
        %1488 = vmatprep.subr.mxu0 0.0
        %1489 = vmatpush1.msra.mxu0 0.0
        %1490 = vmatprep.subr.mxu0 0.0
        %1491 = vmatpush1.msra.mxu0 0.0
        %1492 = vmatprep.subr.mxu0 0.0
        %1493 = vmatpush1.msra.mxu0 0.0
        %1494 = vmatprep.subr.mxu0 0.0
        %1495 = vmatpush1.msra.mxu0 0.0
        %1496 = vmatprep.subr.mxu0 0.0
        %1497 = vmatpush1.msra.mxu0 0.0
        %1498 = vmatprep.subr.mxu0 0.0
        %1499 = vmatpush1.msra.mxu0 0.0
        %1500 = vmatprep.subr.mxu0 0.0
        %1501 = vmatpush1.msra.mxu0 0.0
        %1502 = vmatprep.subr.mxu0 0.0
        %1503 = vmatpush1.msra.mxu0 0.0
        %1504 = vmatprep.subr.mxu0 0.0
        %1505 = vmatpush1.msra.mxu0 0.0
        %1506 = vmatprep.subr.mxu0 0.0
        %1507 = vmatpush1.msra.mxu0 0.0
        %1508 = vmatprep.subr.mxu0 0.0
        %1509 = vmatpush1.msra.mxu0 0.0
        %1510 = vmatprep.subr.mxu0 0.0
        %1511 = vmatpush1.msra.mxu0 0.0
        %1512 = vmatprep.subr.mxu0 0.0
        %1513 = vmatpush1.msra.mxu0 0.0
        %1514 = vmatprep.subr.mxu0 0.0
        %1515 = vmatpush1.msra.mxu0 0.0
        %1516 = vmatprep.subr.mxu0 0.0
        %1517 = vmatpush1.msra.mxu0 0.0
        %1518 = vmatprep.subr.mxu0 0.0
        %1519 = vmatpush1.msra.mxu0 0.0
        %1520 = vmatprep.subr.mxu0 0.0
        %1521 = vmatpush1.msra.mxu0 0.0
        %1522 = vmatprep.subr.mxu0 0.0
        %1523 = vmatpush1.msra.mxu0 0.0
        %1524 = vmatprep.subr.mxu0 0.0
        %1525 = vmatpush1.msra.mxu0 0.0
        %1526 = vmatprep.subr.mxu0 0.0
        %1527 = vmatpush1.msra.mxu0 0.0
        %1528 = vmatprep.subr.mxu0 0.0
        %1529 = vmatpush1.msra.mxu0 0.0
        %1530 = vmatprep.subr.mxu0 0.0
        %1531 = vmatpush1.msra.mxu0 0.0
        %1532 = vmatprep.subr.mxu0 0.0
        %1533 = vmatpush1.msra.mxu0 0.0
        %1534 = vmatprep.mubr.f32.mxu0 0.0
        %1535 = vmatmul.mubr.f32.gmra.mrb[0].mxu0 %v1468
        %v1536 = vpop.f32.mrb[0].mxu0
        %v1537 = vadd.f32 %v1464, %v1536
        %v1538 = vpop.f32.mrb[0].mxu0
        %1539 = vdwg.mxu0
        %s1540 = scalar_lea.vmem [#allocation4], 16
        %v1541 = vld [vmem:[%s1540] sm:$0xff]
        %v1543 = vsel %vm597, %v1541, 0
        %1545 = vmatprep.subr.mxu0 0.0
        %1546 = vmatpush1.msra.mxu0 %v1226
        %1547 = vmatprep.subr.mxu0 0.0
        %1548 = vmatpush1.msra.mxu0 %v1227
        %1549 = vmatprep.subr.mxu0 0.0
        %1550 = vmatpush1.msra.mxu0 0.0
        %1551 = vmatprep.subr.mxu0 0.0
        %1552 = vmatpush1.msra.mxu0 0.0
        %1553 = vmatprep.subr.mxu0 0.0
        %1554 = vmatpush1.msra.mxu0 0.0
        %1555 = vmatprep.subr.mxu0 0.0
        %1556 = vmatpush1.msra.mxu0 0.0
        %1557 = vmatprep.subr.mxu0 0.0
        %1558 = vmatpush1.msra.mxu0 0.0
        %1559 = vmatprep.subr.mxu0 0.0
        %1560 = vmatpush1.msra.mxu0 0.0
        %1561 = vmatprep.subr.mxu0 0.0
        %1562 = vmatpush1.msra.mxu0 0.0
        %1563 = vmatprep.subr.mxu0 0.0
        %1564 = vmatpush1.msra.mxu0 0.0
        %1565 = vmatprep.subr.mxu0 0.0
        %1566 = vmatpush1.msra.mxu0 0.0
        %1567 = vmatprep.subr.mxu0 0.0
        %1568 = vmatpush1.msra.mxu0 0.0
        %1569 = vmatprep.subr.mxu0 0.0
        %1570 = vmatpush1.msra.mxu0 0.0
        %1571 = vmatprep.subr.mxu0 0.0
        %1572 = vmatpush1.msra.mxu0 0.0
        %1573 = vmatprep.subr.mxu0 0.0
        %1574 = vmatpush1.msra.mxu0 0.0
        %1575 = vmatprep.subr.mxu0 0.0
        %1576 = vmatpush1.msra.mxu0 0.0
        %1577 = vmatprep.subr.mxu0 0.0
        %1578 = vmatpush1.msra.mxu0 0.0
        %1579 = vmatprep.subr.mxu0 0.0
        %1580 = vmatpush1.msra.mxu0 0.0
        %1581 = vmatprep.subr.mxu0 0.0
        %1582 = vmatpush1.msra.mxu0 0.0
        %1583 = vmatprep.subr.mxu0 0.0
        %1584 = vmatpush1.msra.mxu0 0.0
        %1585 = vmatprep.subr.mxu0 0.0
        %1586 = vmatpush1.msra.mxu0 0.0
        %1587 = vmatprep.subr.mxu0 0.0
        %1588 = vmatpush1.msra.mxu0 0.0
        %1589 = vmatprep.subr.mxu0 0.0
        %1590 = vmatpush1.msra.mxu0 0.0
        %1591 = vmatprep.subr.mxu0 0.0
        %1592 = vmatpush1.msra.mxu0 0.0
        %1593 = vmatprep.subr.mxu0 0.0
        %1594 = vmatpush1.msra.mxu0 0.0
        %1595 = vmatprep.subr.mxu0 0.0
        %1596 = vmatpush1.msra.mxu0 0.0
        %1597 = vmatprep.subr.mxu0 0.0
        %1598 = vmatpush1.msra.mxu0 0.0
        %1599 = vmatprep.subr.mxu0 0.0
        %1600 = vmatpush1.msra.mxu0 0.0
        %1601 = vmatprep.subr.mxu0 0.0
        %1602 = vmatpush1.msra.mxu0 0.0
        %1603 = vmatprep.subr.mxu0 0.0
        %1604 = vmatpush1.msra.mxu0 0.0
        %1605 = vmatprep.subr.mxu0 0.0
        %1606 = vmatpush1.msra.mxu0 0.0
        %1607 = vmatprep.subr.mxu0 0.0
        %1608 = vmatpush1.msra.mxu0 0.0
        %1609 = vmatprep.mubr.f32.mxu0 0.0
        %1610 = vmatmul.mubr.f32.gmra.mrb[0].mxu0 %v1543
        %v1611 = vpop.f32.mrb[0].mxu0
        %v1612 = vadd.f32 0.0, %v1611
        %v1613 = vpop.f32.mrb[0].mxu0
        %1614 = vdwg.mxu0
        %s1615 = scalar_lea.vmem %s3, 128
        %v1616 = vld [vmem:[%s1615] sm:$0xff]
        %v1617 = vld [vmem:[%s1615 + $0x8] sm:$0xff]
        %v1618 = vld [vmem:[%s1615 + $0x10] sm:$0xff]
        %v1619 = vld [vmem:[%s1615 + $0x18] sm:$0xff]
        %v1620 = vld [vmem:[%s1615 + $0x20] sm:$0xff]
        %v1621 = vld [vmem:[%s1615 + $0x28] sm:$0xff]
        %v1622 = vld [vmem:[%s1615 + $0x30] sm:$0xff]
        %v1623 = vld [vmem:[%s1615 + $0x38] sm:$0xff]
        %v1625 = vsel %vm403, %v1612, 0
        %1627 = vmatprep.subr.mxu0 0.0
        %1628 = vmatpush1.msra.mxu0 %v1616
        %1629 = vmatprep.subr.mxu0 0.0
        %1630 = vmatpush1.msra.mxu0 %v1617
        %1631 = vmatprep.subr.mxu0 0.0
        %1632 = vmatpush1.msra.mxu0 %v1618
        %1633 = vmatprep.subr.mxu0 0.0
        %1634 = vmatpush1.msra.mxu0 %v1619
        %1635 = vmatprep.subr.mxu0 0.0
        %1636 = vmatpush1.msra.mxu0 %v1620
        %1637 = vmatprep.subr.mxu0 0.0
        %1638 = vmatpush1.msra.mxu0 %v1621
        %1639 = vmatprep.subr.mxu0 0.0
        %1640 = vmatpush1.msra.mxu0 %v1622
        %1641 = vmatprep.subr.mxu0 0.0
        %1642 = vmatpush1.msra.mxu0 %v1623
        %1643 = vmatprep.subr.mxu0 0.0
        %1644 = vmatpush1.msra.mxu0 0.0
        %1645 = vmatprep.subr.mxu0 0.0
        %1646 = vmatpush1.msra.mxu0 0.0
        %1647 = vmatprep.subr.mxu0 0.0
        %1648 = vmatpush1.msra.mxu0 0.0
        %1649 = vmatprep.subr.mxu0 0.0
        %1650 = vmatpush1.msra.mxu0 0.0
        %1651 = vmatprep.subr.mxu0 0.0
        %1652 = vmatpush1.msra.mxu0 0.0
        %1653 = vmatprep.subr.mxu0 0.0
        %1654 = vmatpush1.msra.mxu0 0.0
        %1655 = vmatprep.subr.mxu0 0.0
        %1656 = vmatpush1.msra.mxu0 0.0
        %1657 = vmatprep.subr.mxu0 0.0
        %1658 = vmatpush1.msra.mxu0 0.0
        %1659 = vmatprep.subr.mxu0 0.0
        %1660 = vmatpush1.msra.mxu0 0.0
        %1661 = vmatprep.subr.mxu0 0.0
        %1662 = vmatpush1.msra.mxu0 0.0
        %1663 = vmatprep.subr.mxu0 0.0
        %1664 = vmatpush1.msra.mxu0 0.0
        %1665 = vmatprep.subr.mxu0 0.0
        %1666 = vmatpush1.msra.mxu0 0.0
        %1667 = vmatprep.subr.mxu0 0.0
        %1668 = vmatpush1.msra.mxu0 0.0
        %1669 = vmatprep.subr.mxu0 0.0
        %1670 = vmatpush1.msra.mxu0 0.0
        %1671 = vmatprep.subr.mxu0 0.0
        %1672 = vmatpush1.msra.mxu0 0.0
        %1673 = vmatprep.subr.mxu0 0.0
        %1674 = vmatpush1.msra.mxu0 0.0
        %1675 = vmatprep.subr.mxu0 0.0
        %1676 = vmatpush1.msra.mxu0 0.0
        %1677 = vmatprep.subr.mxu0 0.0
        %1678 = vmatpush1.msra.mxu0 0.0
        %1679 = vmatprep.subr.mxu0 0.0
        %1680 = vmatpush1.msra.mxu0 0.0
        %1681 = vmatprep.subr.mxu0 0.0
        %1682 = vmatpush1.msra.mxu0 0.0
        %1683 = vmatprep.subr.mxu0 0.0
        %1684 = vmatpush1.msra.mxu0 0.0
        %1685 = vmatprep.subr.mxu0 0.0
        %1686 = vmatpush1.msra.mxu0 0.0
        %1687 = vmatprep.subr.mxu0 0.0
        %1688 = vmatpush1.msra.mxu0 0.0
        %1689 = vmatprep.subr.mxu0 0.0
        %1690 = vmatpush1.msra.mxu0 0.0
        %1691 = vmatprep.mubr.f32.mxu0 0.0
        %1692 = vmatmul.mubr.f32.gmra.mrb[0].mxu0 %v1625
        %v1693 = vpop.f32.mrb[0].mxu0
        %v1694 = vadd.f32 0.0, %v1693
        %v1695 = vpop.f32.mrb[0].mxu0
        %1696 = vdwg.mxu0
        %v1697 = vadd.f32 %v1537, %v1694
        %1698 = vmatprep.subr.mxu0 0.0
        %1699 = vmatpush1.msra.mxu0 %v392
        %1700 = vmatprep.subr.mxu0 0.0
        %1701 = vmatpush1.msra.mxu0 %v393
        %1702 = vmatprep.subr.mxu0 0.0
        %1703 = vmatpush1.msra.mxu0 0.0
        %1704 = vmatprep.subr.mxu0 0.0
        %1705 = vmatpush1.msra.mxu0 0.0
        %1706 = vmatprep.subr.mxu0 0.0
        %1707 = vmatpush1.msra.mxu0 0.0
        %1708 = vmatprep.subr.mxu0 0.0
        %1709 = vmatpush1.msra.mxu0 0.0
        %1710 = vmatprep.subr.mxu0 0.0
        %1711 = vmatpush1.msra.mxu0 0.0
        %1712 = vmatprep.subr.mxu0 0.0
        %1713 = vmatpush1.msra.mxu0 0.0
        %1714 = vmatprep.subr.mxu0 0.0
        %1715 = vmatpush1.msra.mxu0 0.0
        %1716 = vmatprep.subr.mxu0 0.0
        %1717 = vmatpush1.msra.mxu0 0.0
        %1718 = vmatprep.subr.mxu0 0.0
        %1719 = vmatpush1.msra.mxu0 0.0
        %1720 = vmatprep.subr.mxu0 0.0
        %1721 = vmatpush1.msra.mxu0 0.0
        %1722 = vmatprep.subr.mxu0 0.0
        %1723 = vmatpush1.msra.mxu0 0.0
        %1724 = vmatprep.subr.mxu0 0.0
        %1725 = vmatpush1.msra.mxu0 0.0
        %1726 = vmatprep.subr.mxu0 0.0
        %1727 = vmatpush1.msra.mxu0 0.0
        %1728 = vmatprep.subr.mxu0 0.0
        %1729 = vmatpush1.msra.mxu0 0.0
        %1730 = vmatprep.subr.mxu0 0.0
        %1731 = vmatpush1.msra.mxu0 0.0
        %1732 = vmatprep.subr.mxu0 0.0
        %1733 = vmatpush1.msra.mxu0 0.0
        %1734 = vmatprep.subr.mxu0 0.0
        %1735 = vmatpush1.msra.mxu0 0.0
        %1736 = vmatprep.subr.mxu0 0.0
        %1737 = vmatpush1.msra.mxu0 0.0
        %1738 = vmatprep.subr.mxu0 0.0
        %1739 = vmatpush1.msra.mxu0 0.0
        %1740 = vmatprep.subr.mxu0 0.0
        %1741 = vmatpush1.msra.mxu0 0.0
        %1742 = vmatprep.subr.mxu0 0.0
        %1743 = vmatpush1.msra.mxu0 0.0
        %1744 = vmatprep.subr.mxu0 0.0
        %1745 = vmatpush1.msra.mxu0 0.0
        %1746 = vmatprep.subr.mxu0 0.0
        %1747 = vmatpush1.msra.mxu0 0.0
        %1748 = vmatprep.subr.mxu0 0.0
        %1749 = vmatpush1.msra.mxu0 0.0
        %1750 = vmatprep.subr.mxu0 0.0
        %1751 = vmatpush1.msra.mxu0 0.0
        %1752 = vmatprep.subr.mxu0 0.0
        %1753 = vmatpush1.msra.mxu0 0.0
        %1754 = vmatprep.subr.mxu0 0.0
        %1755 = vmatpush1.msra.mxu0 0.0
        %1756 = vmatprep.subr.mxu0 0.0
        %1757 = vmatpush1.msra.mxu0 0.0
        %1758 = vmatprep.subr.mxu0 0.0
        %1759 = vmatpush1.msra.mxu0 0.0
        %1760 = vmatprep.subr.mxu0 0.0
        %1761 = vmatpush1.msra.mxu0 0.0
        %1762 = vmatprep.mubr.f32.mxu0 0.0
        %1763 = vmatmul.mubr.f32.gmra.mrb[0].mxu0 %v1313
        %v1764 = vpop.f32.mrb[0].mxu0
        %v1765 = vadd.f32 0.0, %v1764
        %v1766 = vpop.f32.mrb[0].mxu0
        %1767 = vdwg.mxu0
        %v1768 = vld [vmem:[#allocation6] sm:$0xff]
        %v1769 = vld [vmem:[#allocation6 + $0x8] sm:$0xff]
        %v1770 = vld [vmem:[#allocation6 + $0x10] sm:$0xff]
        %v1771 = vld [vmem:[#allocation6 + $0x18] sm:$0xff]
        %v1772 = vld [vmem:[#allocation6 + $0x20] sm:$0xff]
        %v1773 = vld [vmem:[#allocation6 + $0x28] sm:$0xff]
        %v1774 = vld [vmem:[#allocation6 + $0x30] sm:$0xff]
        %v1775 = vld [vmem:[#allocation6 + $0x38] sm:$0xff]
        %v1777 = vsel %vm403, %v1765, 0
        %1779 = vmatprep.subr.mxu0 0.0
        %1780 = vmatpush1.msra.mxu0 %v1768
        %1781 = vmatprep.subr.mxu0 0.0
        %1782 = vmatpush1.msra.mxu0 %v1769
        %1783 = vmatprep.subr.mxu0 0.0
        %1784 = vmatpush1.msra.mxu0 %v1770
        %1785 = vmatprep.subr.mxu0 0.0
        %1786 = vmatpush1.msra.mxu0 %v1771
        %1787 = vmatprep.subr.mxu0 0.0
        %1788 = vmatpush1.msra.mxu0 %v1772
        %1789 = vmatprep.subr.mxu0 0.0
        %1790 = vmatpush1.msra.mxu0 %v1773
        %1791 = vmatprep.subr.mxu0 0.0
        %1792 = vmatpush1.msra.mxu0 %v1774
        %1793 = vmatprep.subr.mxu0 0.0
        %1794 = vmatpush1.msra.mxu0 %v1775
        %1795 = vmatprep.subr.mxu0 0.0
        %1796 = vmatpush1.msra.mxu0 0.0
        %1797 = vmatprep.subr.mxu0 0.0
        %1798 = vmatpush1.msra.mxu0 0.0
        %1799 = vmatprep.subr.mxu0 0.0
        %1800 = vmatpush1.msra.mxu0 0.0
        %1801 = vmatprep.subr.mxu0 0.0
        %1802 = vmatpush1.msra.mxu0 0.0
        %1803 = vmatprep.subr.mxu0 0.0
        %1804 = vmatpush1.msra.mxu0 0.0
        %1805 = vmatprep.subr.mxu0 0.0
        %1806 = vmatpush1.msra.mxu0 0.0
        %1807 = vmatprep.subr.mxu0 0.0
        %1808 = vmatpush1.msra.mxu0 0.0
        %1809 = vmatprep.subr.mxu0 0.0
        %1810 = vmatpush1.msra.mxu0 0.0
        %1811 = vmatprep.subr.mxu0 0.0
        %1812 = vmatpush1.msra.mxu0 0.0
        %1813 = vmatprep.subr.mxu0 0.0
        %1814 = vmatpush1.msra.mxu0 0.0
        %1815 = vmatprep.subr.mxu0 0.0
        %1816 = vmatpush1.msra.mxu0 0.0
        %1817 = vmatprep.subr.mxu0 0.0
        %1818 = vmatpush1.msra.mxu0 0.0
        %1819 = vmatprep.subr.mxu0 0.0
        %1820 = vmatpush1.msra.mxu0 0.0
        %1821 = vmatprep.subr.mxu0 0.0
        %1822 = vmatpush1.msra.mxu0 0.0
        %1823 = vmatprep.subr.mxu0 0.0
        %1824 = vmatpush1.msra.mxu0 0.0
        %1825 = vmatprep.subr.mxu0 0.0
        %1826 = vmatpush1.msra.mxu0 0.0
        %1827 = vmatprep.subr.mxu0 0.0
        %1828 = vmatpush1.msra.mxu0 0.0
        %1829 = vmatprep.subr.mxu0 0.0
        %1830 = vmatpush1.msra.mxu0 0.0
        %1831 = vmatprep.subr.mxu0 0.0
        %1832 = vmatpush1.msra.mxu0 0.0
        %1833 = vmatprep.subr.mxu0 0.0
        %1834 = vmatpush1.msra.mxu0 0.0
        %1835 = vmatprep.subr.mxu0 0.0
        %1836 = vmatpush1.msra.mxu0 0.0
        %1837 = vmatprep.subr.mxu0 0.0
        %1838 = vmatpush1.msra.mxu0 0.0
        %1839 = vmatprep.subr.mxu0 0.0
        %1840 = vmatpush1.msra.mxu0 0.0
        %1841 = vmatprep.subr.mxu0 0.0
        %1842 = vmatpush1.msra.mxu0 0.0
        %1843 = vmatprep.mubr.f32.mxu0 0.0
        %1844 = vmatmul.mubr.f32.gmra.mrb[0].mxu0 %v1777
        %v1845 = vpop.f32.mrb[0].mxu0
        %v1846 = vadd.f32 0.0, %v1845
        %v1847 = vpop.f32.mrb[0].mxu0
        %1848 = vdwg.mxu0
        %v1849 = vadd.f32 %v1697, %v1846
        %v1850 = vld [vmem:[%s8] sm:$0x1]
        %v1852 = vlaneseq
        %v1853 = vshrl.u32 %v1852, 7
        %v1854 = vsub.s32 0, %v1853
        %v1855 = vrot.slane %v1850, %v1854
        %v1857 = vadd.f32 %v1849, %v1855
        %1858 = vst.msk [vmem:[%s391] sm:$0xff] %vm403, %v1857
        %p1859 = scmp.lt.s32.totalorder %s22, 1
        %s1860 = scalar_select %p1859, %s22, 1
        %s1861 = smul.addr %s1860, 8
        %s1862 = scalar_lea.vmem %s9, %s1861
        // Predicated region
        $region69: #{con_down_residual_block.1} parent=55 // pred_check
          %p1863 = pneg %p239
        $region70: #{con_down_residual_block.1} parent=55 // pred_check_branch
          %1865 = sbr.rel (%p1863) target = $region72
        $region71: #{con_down_residual_block.1} parent=55 // pred_region
          _
        $region72: #{con_down_residual_block.1} parent=55 // pred_fallthru
          _
      $region56: #{con_down_residual_block.1} parent=5 // pred_fallthru
        _
      %p1866 = scmp.le.s32.totalorder 2, %s17
      // Predicated region
      $region73: #{con_down_residual_block.1} parent=5 // pred_check
        %p1867 = pneg %p1866
      $region74: #{con_down_residual_block.1} parent=5 // pred_check_branch
        %1869 = sbr.rel (%p1867) target = $region76
      $region75: #{con_down_residual_block.1} parent=5 // pred_region
        %s1870 = ssub.s32 %s17, 2
        // Predicated region
        $region77: #{con_down_residual_block.1} parent=75 // pred_check
          %p1871 = pneg %p245
        $region78: #{con_down_residual_block.1} parent=75 // pred_check_branch
          %1873 = sbr.rel (%p1871) target = $region80
        $region79: #{con_down_residual_block.1} parent=75 // pred_region
          %p1874 = scmp.lt.s32.totalorder %s23, 1
          %s1875 = scalar_select %p1874, %s23, 1
          %s1876 = smul.addr %s1875, 8
          %s1877 = scalar_lea.vmem %s9, %s1876
        $region80: #{con_down_residual_block.1} parent=75 // pred_fallthru
          _
      $region76: #{con_down_residual_block.1} parent=5 // pred_fallthru
        _
    $region6: #{con_down_residual_block.1} parent=1 // loop_footer
      %s21 = sadd.s32 1, %s17
    $region7: #{con_down_residual_block.1} parent=1 // loop_footer_branch
      %16 = sbr.rel target = $region3
    $region8: #{con_down_residual_block.1} parent=1 // loop_exit
      _
    %1878 = vsyncpa [#allocation3], 1
    %s1879 = scalar_lea.sflag [#allocation3], 1
    %1880 = vsyncpa %s1879, 1
    %1881 = vsyncpa [#allocation5], 1

</llo_original>
